<compile_context>
chip_gen: v6e
topology: v6e:2x2x1
jax: 0.10.0
libtpu: 0.0.40
codegen_flags: <defaults>
</compile_context>

<pallas_src>
import jax
import jax.numpy as jnp
from jax.experimental import pallas as pl
from jax.experimental.pallas import tpu as pltpu

NUM_EMBEDDINGS = 800


def embedding_model_kernel(idx_ref, emb_t_ref, w_ref, b_ref, out_ref):
    # idx_ref:   (2, TB) int32 VMEM  -- row 0 = `first` indices, row 1 = `second` indices
    # emb_t_ref: (E, V)  f32  VMEM   -- embedding table, transposed, fully resident
    # w_ref:     (1, 2E) f32  VMEM   -- Linear(2E, 1) weight
    # b_ref:     (1, 1)  f32  SMEM   -- Linear bias (scalar)
    # out_ref:   (1, TB) f32  VMEM   -- sigmoid(logits), lane-dense
    V = emb_t_ref.shape[1]
    TB = out_ref.shape[1]

    # Vectorized gather via one-hot matmul: onehot[v, b] = (v == idx[b]).
    row_ids = jax.lax.broadcasted_iota(jnp.int32, (V, TB), 0)
    onehot_f = (row_ids == idx_ref[0:1, :]).astype(jnp.float32)      # (V, TB)
    onehot_s = (row_ids == idx_ref[1:2, :]).astype(jnp.float32)      # (V, TB)

    f_emb_t = jnp.dot(emb_t_ref[...], onehot_f,
                      preferred_element_type=jnp.float32)            # (E, TB)
    s_emb_t = jnp.dot(emb_t_ref[...], onehot_s,
                      preferred_element_type=jnp.float32)            # (E, TB)

    # cat([f, s], -1) @ W.T  ==  W @ [f_emb_t ; s_emb_t]  (single K=2E contraction)
    cat_t = jnp.concatenate([f_emb_t, s_emb_t], axis=0)              # (2E, TB)
    logits = jnp.dot(w_ref[...], cat_t,
                     preferred_element_type=jnp.float32) + b_ref[0, 0]   # (1, TB)
    out_ref[...] = jax.nn.sigmoid(logits)


def embedding_model_forward(first, second, emb_table, w, bias, *, tile_b=128):
    """first, second: (B,) integer indices; emb_table: (800, E); w: (1, 2E); bias: (1,)."""
    B = first.shape[0]
    V, E = emb_table.shape

    num_tiles = pl.cdiv(B, tile_b)
    Bp = num_tiles * tile_b
    pad = Bp - B
    # Pad with index 0 (a valid row); padded lanes are discarded after the call.
    first_p = jnp.pad(first.astype(jnp.int32), (0, pad))
    second_p = jnp.pad(second.astype(jnp.int32), (0, pad))
    idx = jnp.stack([first_p, second_p], axis=0)            # (2, Bp) int32

    emb_t = emb_table.astype(jnp.float32).T                 # (E, V)
    w_f = w.astype(jnp.float32)                             # (1, 2E)
    b2d = bias.reshape(1, 1).astype(jnp.float32)            # (1, 1) -> SMEM

    out = pl.pallas_call(
        embedding_model_kernel,
        out_shape=jax.ShapeDtypeStruct((1, Bp), jnp.float32),
        grid=(num_tiles,),
        in_specs=[
            pl.BlockSpec((2, tile_b), lambda i: (0, i)),             # index tile
            pl.BlockSpec((E, V), lambda i: (0, 0)),                  # full table, resident
            pl.BlockSpec((1, 2 * E), lambda i: (0, 0)),              # weight row
            pl.BlockSpec(memory_space=pltpu.MemorySpace.SMEM),       # bias scalar
        ],
        out_specs=pl.BlockSpec((1, tile_b), lambda i: (0, i)),       # lane-dense logits slab
        compiler_params=pltpu.CompilerParams(
            dimension_semantics=("parallel",)),
    )(idx, emb_t, w_f, b2d)

    return out.reshape(-1)[:B].reshape(B, 1)


if __name__ == "__main__":
    E = 32          # embedding_size
    B = 16          # batch of index pairs

    key = jax.random.PRNGKey(0)
    k1, k2, k3, k4, k5 = jax.random.split(key, 5)

    # Deterministic synthetic parameters (shapes from the module __init__).
    emb_table = jax.random.normal(k1, (NUM_EMBEDDINGS, E), jnp.float32)       # nn.Embedding(800, E)
    bound = 1.0 / (2 * E) ** 0.5
    w = jax.random.uniform(k2, (1, 2 * E), jnp.float32, -bound, bound)        # nn.Linear(2E, 1).weight
    bias = jax.random.uniform(k3, (1,), jnp.float32, -bound, bound)           # nn.Linear(2E, 1).bias

    first = jax.random.randint(k4, (B,), 0, NUM_EMBEDDINGS, jnp.int32)
    second = jax.random.randint(k5, (B,), 0, NUM_EMBEDDINGS, jnp.int32)

    out = embedding_model_forward(first, second, emb_table, w, bias)
    out = jax.block_until_ready(out)

    # Pure-JAX reference (PyTorch semantics, dropout in eval mode).
    f_emb = emb_table[first]
    s_emb = emb_table[second]
    combined = jnp.concatenate([f_emb, s_emb], axis=-1)
    ref = jax.nn.sigmoid(combined @ w.T + bias)

    assert out.shape == (B, 1), out.shape
    assert jnp.allclose(out, ref, atol=1e-5, rtol=1e-5), "mismatch vs reference"
    print("KERNEL_OK")
</pallas_src>

<mosaic_0001>
module attributes {stable_mosaic.version = 11 : i64} {
  func.func @embedding_model_kernel(%arg0: i32, %arg1: memref<2x128xi32, #tpu.memory_space<vmem>>, %arg2: memref<32x800xf32, #tpu.memory_space<vmem>>, %arg3: memref<1x64xf32, #tpu.memory_space<vmem>>, %arg4: memref<1x1xf32, #tpu.memory_space<smem>>, %arg5: memref<1x128xf32, #tpu.memory_space<vmem>>) attributes {dimension_semantics = [#tpu.dimension_semantics<parallel>], iteration_bounds = array<i64: 1>, scalar_prefetch = 0 : i64, scratch_operands = 0 : i64, tpu.core_type = #tpu.core_type<tc>, window_params = [{transform_indices = @transform_0, window_bounds = array<i64: 2, 128>}, {pipeline_mode = #tpu.pipeline_mode<synchronous>, transform_indices = @transform_1, window_bounds = array<i64: 32, 800>}, {pipeline_mode = #tpu.pipeline_mode<synchronous>, transform_indices = @transform_2, window_bounds = array<i64: 1, 64>}, {transform_indices = @transform_3, window_bounds = array<i64: 1, 1>}, {transform_indices = @transform_4, window_bounds = array<i64: 1, 128>}]} {
    %0 = tpu.iota {dimensions = array<i32: 0>} : vector<800x128xi32>
    %c0 = arith.constant 0 : index
    %c0_0 = arith.constant 0 : index
    %1 = vector.load %arg1[%c0, %c0_0] : memref<2x128xi32, #tpu.memory_space<vmem>>, vector<1x128xi32>
    %2 = vector.broadcast %1 : vector<1x128xi32> to vector<800x128xi32>
    %3 = arith.cmpi eq, %0, %2 : vector<800x128xi32>
    %4 = arith.extui %3 : vector<800x128xi1> to vector<800x128xi32>
    %5 = arith.sitofp %4 : vector<800x128xi32> to vector<800x128xf32>
    %c1 = arith.constant 1 : index
    %c0_1 = arith.constant 0 : index
    %6 = vector.load %arg1[%c1, %c0_1] : memref<2x128xi32, #tpu.memory_space<vmem>>, vector<1x128xi32>
    %7 = vector.broadcast %6 : vector<1x128xi32> to vector<800x128xi32>
    %8 = arith.cmpi eq, %0, %7 : vector<800x128xi32>
    %9 = arith.extui %8 : vector<800x128xi1> to vector<800x128xi32>
    %10 = arith.sitofp %9 : vector<800x128xi32> to vector<800x128xf32>
    %c0_2 = arith.constant 0 : index
    %c0_3 = arith.constant 0 : index
    %11 = vector.load %arg2[%c0_2, %c0_3] : memref<32x800xf32, #tpu.memory_space<vmem>>, vector<32x800xf32>
    %cst = arith.constant dense<0.000000e+00> : vector<32x128xf32>
    %12 = tpu.matmul %11, %5, %cst {dimension_numbers = #tpu.dot_dimension_numbers<[1], [0], [0], [1], [0, 0, 1, 1], [], []>} : vector<32x800xf32>, vector<800x128xf32>, vector<32x128xf32> -> vector<32x128xf32>
    %c0_4 = arith.constant 0 : index
    %c0_5 = arith.constant 0 : index
    %13 = vector.load %arg2[%c0_4, %c0_5] : memref<32x800xf32, #tpu.memory_space<vmem>>, vector<32x800xf32>
    %cst_6 = arith.constant dense<0.000000e+00> : vector<32x128xf32>
    %14 = tpu.matmul %13, %10, %cst_6 {dimension_numbers = #tpu.dot_dimension_numbers<[1], [0], [0], [1], [0, 0, 1, 1], [], []>} : vector<32x800xf32>, vector<800x128xf32>, vector<32x128xf32> -> vector<32x128xf32>
    %15 = tpu.concatenate %12, %14 in 0 : vector<32x128xf32>, vector<32x128xf32> -> vector<64x128xf32>
    %c0_7 = arith.constant 0 : index
    %c0_8 = arith.constant 0 : index
    %16 = vector.load %arg3[%c0_7, %c0_8] : memref<1x64xf32, #tpu.memory_space<vmem>>, vector<1x64xf32>
    %cst_9 = arith.constant dense<0.000000e+00> : vector<1x128xf32>
    %17 = tpu.matmul %16, %15, %cst_9 {dimension_numbers = #tpu.dot_dimension_numbers<[1], [0], [0], [1], [0, 0, 1, 1], [], []>} : vector<1x64xf32>, vector<64x128xf32>, vector<1x128xf32> -> vector<1x128xf32>
    %c0_10 = arith.constant 0 : index
    %c0_11 = arith.constant 0 : index
    %18 = memref.load %arg4[%c0_10, %c0_11] : memref<1x1xf32, #tpu.memory_space<smem>>
    %19 = vector.broadcast %18 : f32 to vector<1x128xf32>
    %20 = arith.addf %17, %19 : vector<1x128xf32>
    %21 = arith.negf %20 : vector<1x128xf32>
    %22 = math.exp %21 : vector<1x128xf32>
    %cst_12 = arith.constant 1.000000e+00 : f32
    %23 = vector.broadcast %cst_12 : f32 to vector<1x128xf32>
    %24 = arith.addf %23, %22 : vector<1x128xf32>
    %25 = arith.divf %23, %24 : vector<1x128xf32>
    %c0_13 = arith.constant 0 : index
    %c0_14 = arith.constant 0 : index
    %26 = vector.load %arg5[%c0_13, %c0_14] : memref<1x128xf32, #tpu.memory_space<vmem>>, vector<1x128xf32>
    tpu.vector_store %arg5[%c0_13, %c0_14], %25 {strides = array<i32>} : memref<1x128xf32, #tpu.memory_space<vmem>>, vector<1x128xf32>,
    return
  }
  func.func @transform_0(%arg0: i32) -> (i32, i32) {
    %c0_i32 = arith.constant 0 : i32
    %c0_i32_0 = arith.constant 0 : i32
    return %c0_i32, %arg0 : i32, i32
  }
  func.func @transform_1(%arg0: i32) -> (i32, i32) {
    %c0_i32 = arith.constant 0 : i32
    %c0_i32_0 = arith.constant 0 : i32
    %c0_i32_1 = arith.constant 0 : i32
    return %c0_i32, %c0_i32_0 : i32, i32
  }
  func.func @transform_2(%arg0: i32) -> (i32, i32) {
    %c0_i32 = arith.constant 0 : i32
    %c0_i32_0 = arith.constant 0 : i32
    %c0_i32_1 = arith.constant 0 : i32
    return %c0_i32, %c0_i32_0 : i32, i32
  }
  func.func @transform_3(%arg0: i32) -> (i32, i32) {
    %c0_i32 = arith.constant 0 : i32
    %c0_i32_0 = arith.constant 0 : i32
    %c0_i32_1 = arith.constant 0 : i32
    return %c0_i32, %c0_i32_0 : i32, i32
  }
  func.func @transform_4(%arg0: i32) -> (i32, i32) {
    %c0_i32 = arith.constant 0 : i32
    %c0_i32_0 = arith.constant 0 : i32
    return %c0_i32, %arg0 : i32, i32
  }
}

</mosaic_0001>

<llo_original>
// kernel: tpu_custom_call.1
$region0: #{tpu_custom_call.1}
  #allocation0 [shape = 'u32[]', space=smem, size = 0x4, offset = 0x4, fixed_abs, tag = 'smem constant byte address 0x4 - core index']
  #allocation1 [shape = 'u32[144,128]{1,0:T(1,128)}', space=vmem, size = 0x12000, scoped, tag = 'internal scratch']
  #allocation2 [shape = 'f32[1,1]{1,0:T(1,128)S(6)}', space=smem, size = 0x200, scoped, tag = 'scoped memory for tpu_custom_call.1']
  %s0 = inlined_call_operand.vmem [shape: s32[2,128], index: 0, kind: input, shape index: {}]
  %s1 = inlined_call_operand.hbm [shape: f32[32,800], index: 1, kind: input, shape index: {}]
  %s2 = inlined_call_operand.vmem [shape: f32[1,64], index: 2, kind: input, shape index: {}]
  %s3 = inlined_call_operand.<no memory space> [shape: f32[1,1], index: 3, kind: input, shape index: {}]
  %s4 = inlined_call_operand.hbm [shape: f32[1,128], index: 4, kind: output, shape index: {}]
  %s5 = sld [smem:[#allocation0]]
  $region30: #{tpu_custom_call.1} parent=0
    _
  %s7 = ssub.s32 1, %s5
  %s8 = scalar_select 0, %s7, %s5
  %9 = sst [smem:[#allocation2]] %s3
  $region1: #{tpu_custom_call.1} parent=0
    #allocation3 [shape = 'u8[114688]{0}', space=vmem, size = 0x1c000, scoped, tag = 'input window, operand 1, single buffered']
    #allocation4 [shape = 's32[1]{0}', space=sflag, size = 0x4, scoped, tag = 'scoped memory for tpu_custom_call.1']
    #allocation5 [shape = 's32[1]{0}', space=sflag, size = 0x4, scoped, tag = 'scoped memory for tpu_custom_call.1']
    #allocation6 [shape = 'u8[512]{0}', space=vmem, size = 0x400, scoped, tag = 'output window, operand 0, single buffered']
    %10 = vsyncpa [#allocation4], 0
    %11 = vsyncpa [#allocation5], 0
    // Predicated region
    $region2: #{tpu_custom_call.1} parent=1 // pred_check
      _
    $region3: #{tpu_custom_call.1} parent=1 // pred_check_branch
      %13 = sbr.rel (0) target = $region5
    $region4: #{tpu_custom_call.1} parent=1 // pred_region
      _
    $region5: #{tpu_custom_call.1} parent=1 // pred_fallthru
      _
    // Predicated region
    $region6: #{tpu_custom_call.1} parent=1 // pred_check
      _
    $region7: #{tpu_custom_call.1} parent=1 // pred_check_branch
      %15 = sbr.rel (0) target = $region9
    $region8: #{tpu_custom_call.1} parent=1 // pred_region
      %s17 = ssub.s32 3584, 3584
      %18 = vsyncadd [#allocation4], %s17
      %s19 = sshll.u32 [#allocation3], 4
      %s20 = int_to_ptr.vmem [resolvable:$true] %s19
      %25 = dma.hbm_to_vmem [thread:$0]  %s1, 3584, %s20, [#allocation4], 896, 896, 56
    $region9: #{tpu_custom_call.1} parent=1 // pred_fallthru
      _
    // Predicated region
    $region10: #{tpu_custom_call.1} parent=1 // pred_check
      _
    $region11: #{tpu_custom_call.1} parent=1 // pred_check_branch
      %27 = sbr.rel (0) target = $region13
    $region12: #{tpu_custom_call.1} parent=1 // pred_region
      _
    $region13: #{tpu_custom_call.1} parent=1 // pred_fallthru
      _
    // Predicated region
    $region14: #{tpu_custom_call.1} parent=1 // pred_check
      _
    $region15: #{tpu_custom_call.1} parent=1 // pred_check_branch
      %29 = sbr.rel (0) target = $region17
    $region16: #{tpu_custom_call.1} parent=1 // pred_region
      _
    $region17: #{tpu_custom_call.1} parent=1 // pred_fallthru
      _
    // Predicated region
    $region18: #{tpu_custom_call.1} parent=1 // pred_check
      _
    $region19: #{tpu_custom_call.1} parent=1 // pred_check_branch
      %31 = sbr.rel (0) target = $region21
    $region20: #{tpu_custom_call.1} parent=1 // pred_region
      %32 = dma.done [#allocation4], 3584
    $region21: #{tpu_custom_call.1} parent=1 // pred_fallthru
      _
    %v33 = vlaneseq
    %v34 = vshrl.u32 %v33, 7
    %v35 = vadd.s32 %v34, 8
    %v36 = vadd.s32 %v34, 16
    %v37 = vadd.s32 %v34, 24
    %v38 = vadd.s32 %v34, 32
    %v39 = vadd.s32 %v34, 40
    %v40 = vadd.s32 %v34, 48
    %v41 = vadd.s32 %v34, 56
    %v42 = vadd.s32 %v34, 64
    %v43 = vadd.s32 %v34, 72
    %v44 = vadd.s32 %v34, 80
    %v45 = vadd.s32 %v34, 88
    %v46 = vadd.s32 %v34, 96
    %v47 = vadd.s32 %v34, 104
    %v48 = vadd.s32 %v34, 112
    %v49 = vadd.s32 %v34, 120
    %v50 = vadd.s32 %v34, 128
    %v51 = vadd.s32 %v34, 136
    %v52 = vadd.s32 %v34, 144
    %v53 = vadd.s32 %v34, 152
    %v54 = vadd.s32 %v34, 160
    %v55 = vadd.s32 %v34, 168
    %v56 = vadd.s32 %v34, 176
    %v57 = vadd.s32 %v34, 184
    %v58 = vadd.s32 %v34, 192
    %v59 = vadd.s32 %v34, 200
    %v60 = vadd.s32 %v34, 208
    %v61 = vadd.s32 %v34, 216
    %v62 = vadd.s32 %v34, 224
    %v63 = vadd.s32 %v34, 232
    %v64 = vadd.s32 %v34, 240
    %v65 = vadd.s32 %v34, 248
    %v66 = vadd.s32 %v34, 256
    %v67 = vadd.s32 %v34, 264
    %v68 = vadd.s32 %v34, 272
    %v69 = vadd.s32 %v34, 280
    %v70 = vadd.s32 %v34, 288
    %v71 = vadd.s32 %v34, 296
    %v72 = vadd.s32 %v34, 304
    %v73 = vadd.s32 %v34, 312
    %v74 = vadd.s32 %v34, 320
    %v75 = vadd.s32 %v34, 328
    %v76 = vadd.s32 %v34, 336
    %v77 = vadd.s32 %v34, 344
    %v78 = vadd.s32 %v34, 352
    %v79 = vadd.s32 %v34, 360
    %v80 = vadd.s32 %v34, 368
    %v81 = vadd.s32 %v34, 376
    %v82 = vadd.s32 %v34, 384
    %v83 = vadd.s32 %v34, 392
    %v84 = vadd.s32 %v34, 400
    %v85 = vadd.s32 %v34, 408
    %v86 = vadd.s32 %v34, 416
    %v87 = vadd.s32 %v34, 424
    %v88 = vadd.s32 %v34, 432
    %v89 = vadd.s32 %v34, 440
    %v90 = vadd.s32 %v34, 448
    %v91 = vadd.s32 %v34, 456
    %v92 = vadd.s32 %v34, 464
    %v93 = vadd.s32 %v34, 472
    %v94 = vadd.s32 %v34, 480
    %v95 = vadd.s32 %v34, 488
    %v96 = vadd.s32 %v34, 496
    %v97 = vadd.s32 %v34, 504
    %v98 = vadd.s32 %v34, 512
    %v99 = vadd.s32 %v34, 520
    %v100 = vadd.s32 %v34, 528
    %v101 = vadd.s32 %v34, 536
    %v102 = vadd.s32 %v34, 544
    %v103 = vadd.s32 %v34, 552
    %v104 = vadd.s32 %v34, 560
    %v105 = vadd.s32 %v34, 568
    %v106 = vadd.s32 %v34, 576
    %v107 = vadd.s32 %v34, 584
    %v108 = vadd.s32 %v34, 592
    %v109 = vadd.s32 %v34, 600
    %v110 = vadd.s32 %v34, 608
    %v111 = vadd.s32 %v34, 616
    %v112 = vadd.s32 %v34, 624
    %v113 = vadd.s32 %v34, 632
    %v114 = vadd.s32 %v34, 640
    %v115 = vadd.s32 %v34, 648
    %v116 = vadd.s32 %v34, 656
    %v117 = vadd.s32 %v34, 664
    %v118 = vadd.s32 %v34, 672
    %v119 = vadd.s32 %v34, 680
    %v120 = vadd.s32 %v34, 688
    %v121 = vadd.s32 %v34, 696
    %v122 = vadd.s32 %v34, 704
    %v123 = vadd.s32 %v34, 712
    %v124 = vadd.s32 %v34, 720
    %v125 = vadd.s32 %v34, 728
    %v126 = vadd.s32 %v34, 736
    %v127 = vadd.s32 %v34, 744
    %v128 = vadd.s32 %v34, 752
    %v129 = vadd.s32 %v34, 760
    %v130 = vadd.s32 %v34, 768
    %v131 = vadd.s32 %v34, 776
    %v132 = vadd.s32 %v34, 784
    %v133 = vadd.s32 %v34, 792
    %v134 = vld [vmem:[%s0] sm:$0x1]
    %v135 = vlaneseq
    %v136 = vshrl.u32 %v135, 7
    %v137 = vsub.s32 0, %v136
    %v138 = vrot.slane %v134, %v137
    %vm139 = vcmp.eq.s32.totalorder %v34, %v138
    %vm140 = vcmp.eq.s32.totalorder %v35, %v138
    %vm141 = vcmp.eq.s32.totalorder %v36, %v138
    %vm142 = vcmp.eq.s32.totalorder %v37, %v138
    %vm143 = vcmp.eq.s32.totalorder %v38, %v138
    %vm144 = vcmp.eq.s32.totalorder %v39, %v138
    %vm145 = vcmp.eq.s32.totalorder %v40, %v138
    %vm146 = vcmp.eq.s32.totalorder %v41, %v138
    %vm147 = vcmp.eq.s32.totalorder %v42, %v138
    %vm148 = vcmp.eq.s32.totalorder %v43, %v138
    %vm149 = vcmp.eq.s32.totalorder %v44, %v138
    %vm150 = vcmp.eq.s32.totalorder %v45, %v138
    %vm151 = vcmp.eq.s32.totalorder %v46, %v138
    %vm152 = vcmp.eq.s32.totalorder %v47, %v138
    %vm153 = vcmp.eq.s32.totalorder %v48, %v138
    %vm154 = vcmp.eq.s32.totalorder %v49, %v138
    %vm155 = vcmp.eq.s32.totalorder %v50, %v138
    %vm156 = vcmp.eq.s32.totalorder %v51, %v138
    %vm157 = vcmp.eq.s32.totalorder %v52, %v138
    %vm158 = vcmp.eq.s32.totalorder %v53, %v138
    %vm159 = vcmp.eq.s32.totalorder %v54, %v138
    %vm160 = vcmp.eq.s32.totalorder %v55, %v138
    %vm161 = vcmp.eq.s32.totalorder %v56, %v138
    %vm162 = vcmp.eq.s32.totalorder %v57, %v138
    %vm163 = vcmp.eq.s32.totalorder %v58, %v138
    %vm164 = vcmp.eq.s32.totalorder %v59, %v138
    %vm165 = vcmp.eq.s32.totalorder %v60, %v138
    %vm166 = vcmp.eq.s32.totalorder %v61, %v138
    %vm167 = vcmp.eq.s32.totalorder %v62, %v138
    %vm168 = vcmp.eq.s32.totalorder %v63, %v138
    %vm169 = vcmp.eq.s32.totalorder %v64, %v138
    %vm170 = vcmp.eq.s32.totalorder %v65, %v138
    %vm171 = vcmp.eq.s32.totalorder %v66, %v138
    %vm172 = vcmp.eq.s32.totalorder %v67, %v138
    %vm173 = vcmp.eq.s32.totalorder %v68, %v138
    %vm174 = vcmp.eq.s32.totalorder %v69, %v138
    %vm175 = vcmp.eq.s32.totalorder %v70, %v138
    %vm176 = vcmp.eq.s32.totalorder %v71, %v138
    %vm177 = vcmp.eq.s32.totalorder %v72, %v138
    %vm178 = vcmp.eq.s32.totalorder %v73, %v138
    %vm179 = vcmp.eq.s32.totalorder %v74, %v138
    %vm180 = vcmp.eq.s32.totalorder %v75, %v138
    %vm181 = vcmp.eq.s32.totalorder %v76, %v138
    %vm182 = vcmp.eq.s32.totalorder %v77, %v138
    %vm183 = vcmp.eq.s32.totalorder %v78, %v138
    %vm184 = vcmp.eq.s32.totalorder %v79, %v138
    %vm185 = vcmp.eq.s32.totalorder %v80, %v138
    %vm186 = vcmp.eq.s32.totalorder %v81, %v138
    %vm187 = vcmp.eq.s32.totalorder %v82, %v138
    %vm188 = vcmp.eq.s32.totalorder %v83, %v138
    %vm189 = vcmp.eq.s32.totalorder %v84, %v138
    %vm190 = vcmp.eq.s32.totalorder %v85, %v138
    %vm191 = vcmp.eq.s32.totalorder %v86, %v138
    %vm192 = vcmp.eq.s32.totalorder %v87, %v138
    %vm193 = vcmp.eq.s32.totalorder %v88, %v138
    %vm194 = vcmp.eq.s32.totalorder %v89, %v138
    %vm195 = vcmp.eq.s32.totalorder %v90, %v138
    %vm196 = vcmp.eq.s32.totalorder %v91, %v138
    %vm197 = vcmp.eq.s32.totalorder %v92, %v138
    %vm198 = vcmp.eq.s32.totalorder %v93, %v138
    %vm199 = vcmp.eq.s32.totalorder %v94, %v138
    %vm200 = vcmp.eq.s32.totalorder %v95, %v138
    %vm201 = vcmp.eq.s32.totalorder %v96, %v138
    %vm202 = vcmp.eq.s32.totalorder %v97, %v138
    %vm203 = vcmp.eq.s32.totalorder %v98, %v138
    %vm204 = vcmp.eq.s32.totalorder %v99, %v138
    %vm205 = vcmp.eq.s32.totalorder %v100, %v138
    %vm206 = vcmp.eq.s32.totalorder %v101, %v138
    %vm207 = vcmp.eq.s32.totalorder %v102, %v138
    %vm208 = vcmp.eq.s32.totalorder %v103, %v138
    %vm209 = vcmp.eq.s32.totalorder %v104, %v138
    %vm210 = vcmp.eq.s32.totalorder %v105, %v138
    %vm211 = vcmp.eq.s32.totalorder %v106, %v138
    %vm212 = vcmp.eq.s32.totalorder %v107, %v138
    %vm213 = vcmp.eq.s32.totalorder %v108, %v138
    %vm214 = vcmp.eq.s32.totalorder %v109, %v138
    %vm215 = vcmp.eq.s32.totalorder %v110, %v138
    %vm216 = vcmp.eq.s32.totalorder %v111, %v138
    %vm217 = vcmp.eq.s32.totalorder %v112, %v138
    %vm218 = vcmp.eq.s32.totalorder %v113, %v138
    %vm219 = vcmp.eq.s32.totalorder %v114, %v138
    %vm220 = vcmp.eq.s32.totalorder %v115, %v138
    %vm221 = vcmp.eq.s32.totalorder %v116, %v138
    %vm222 = vcmp.eq.s32.totalorder %v117, %v138
    %vm223 = vcmp.eq.s32.totalorder %v118, %v138
    %vm224 = vcmp.eq.s32.totalorder %v119, %v138
    %vm225 = vcmp.eq.s32.totalorder %v120, %v138
    %vm226 = vcmp.eq.s32.totalorder %v121, %v138
    %vm227 = vcmp.eq.s32.totalorder %v122, %v138
    %vm228 = vcmp.eq.s32.totalorder %v123, %v138
    %vm229 = vcmp.eq.s32.totalorder %v124, %v138
    %vm230 = vcmp.eq.s32.totalorder %v125, %v138
    %vm231 = vcmp.eq.s32.totalorder %v126, %v138
    %vm232 = vcmp.eq.s32.totalorder %v127, %v138
    %vm233 = vcmp.eq.s32.totalorder %v128, %v138
    %vm234 = vcmp.eq.s32.totalorder %v129, %v138
    %vm235 = vcmp.eq.s32.totalorder %v130, %v138
    %vm236 = vcmp.eq.s32.totalorder %v131, %v138
    %vm237 = vcmp.eq.s32.totalorder %v132, %v138
    %vm238 = vcmp.eq.s32.totalorder %v133, %v138
    %v239 = vsel %vm139, 1, 0
    %v240 = vsel %vm140, 1, 0
    %v241 = vsel %vm141, 1, 0
    %v242 = vsel %vm142, 1, 0
    %v243 = vsel %vm143, 1, 0
    %v244 = vsel %vm144, 1, 0
    %v245 = vsel %vm145, 1, 0
    %v246 = vsel %vm146, 1, 0
    %v247 = vsel %vm147, 1, 0
    %v248 = vsel %vm148, 1, 0
    %v249 = vsel %vm149, 1, 0
    %v250 = vsel %vm150, 1, 0
    %v251 = vsel %vm151, 1, 0
    %v252 = vsel %vm152, 1, 0
    %v253 = vsel %vm153, 1, 0
    %v254 = vsel %vm154, 1, 0
    %v255 = vsel %vm155, 1, 0
    %v256 = vsel %vm156, 1, 0
    %v257 = vsel %vm157, 1, 0
    %v258 = vsel %vm158, 1, 0
    %v259 = vsel %vm159, 1, 0
    %v260 = vsel %vm160, 1, 0
    %v261 = vsel %vm161, 1, 0
    %v262 = vsel %vm162, 1, 0
    %v263 = vsel %vm163, 1, 0
    %v264 = vsel %vm164, 1, 0
    %v265 = vsel %vm165, 1, 0
    %v266 = vsel %vm166, 1, 0
    %v267 = vsel %vm167, 1, 0
    %v268 = vsel %vm168, 1, 0
    %v269 = vsel %vm169, 1, 0
    %v270 = vsel %vm170, 1, 0
    %v271 = vsel %vm171, 1, 0
    %v272 = vsel %vm172, 1, 0
    %v273 = vsel %vm173, 1, 0
    %v274 = vsel %vm174, 1, 0
    %v275 = vsel %vm175, 1, 0
    %v276 = vsel %vm176, 1, 0
    %v277 = vsel %vm177, 1, 0
    %v278 = vsel %vm178, 1, 0
    %v279 = vsel %vm179, 1, 0
    %v280 = vsel %vm180, 1, 0
    %v281 = vsel %vm181, 1, 0
    %v282 = vsel %vm182, 1, 0
    %v283 = vsel %vm183, 1, 0
    %v284 = vsel %vm184, 1, 0
    %v285 = vsel %vm185, 1, 0
    %v286 = vsel %vm186, 1, 0
    %v287 = vsel %vm187, 1, 0
    %v288 = vsel %vm188, 1, 0
    %v289 = vsel %vm189, 1, 0
    %v290 = vsel %vm190, 1, 0
    %v291 = vsel %vm191, 1, 0
    %v292 = vsel %vm192, 1, 0
    %v293 = vsel %vm193, 1, 0
    %v294 = vsel %vm194, 1, 0
    %v295 = vsel %vm195, 1, 0
    %v296 = vsel %vm196, 1, 0
    %v297 = vsel %vm197, 1, 0
    %v298 = vsel %vm198, 1, 0
    %v299 = vsel %vm199, 1, 0
    %v300 = vsel %vm200, 1, 0
    %v301 = vsel %vm201, 1, 0
    %v302 = vsel %vm202, 1, 0
    %v303 = vsel %vm203, 1, 0
    %v304 = vsel %vm204, 1, 0
    %v305 = vsel %vm205, 1, 0
    %v306 = vsel %vm206, 1, 0
    %v307 = vsel %vm207, 1, 0
    %v308 = vsel %vm208, 1, 0
    %v309 = vsel %vm209, 1, 0
    %v310 = vsel %vm210, 1, 0
    %v311 = vsel %vm211, 1, 0
    %v312 = vsel %vm212, 1, 0
    %v313 = vsel %vm213, 1, 0
    %v314 = vsel %vm214, 1, 0
    %v315 = vsel %vm215, 1, 0
    %v316 = vsel %vm216, 1, 0
    %v317 = vsel %vm217, 1, 0
    %v318 = vsel %vm218, 1, 0
    %v319 = vsel %vm219, 1, 0
    %v320 = vsel %vm220, 1, 0
    %v321 = vsel %vm221, 1, 0
    %v322 = vsel %vm222, 1, 0
    %v323 = vsel %vm223, 1, 0
    %v324 = vsel %vm224, 1, 0
    %v325 = vsel %vm225, 1, 0
    %v326 = vsel %vm226, 1, 0
    %v327 = vsel %vm227, 1, 0
    %v328 = vsel %vm228, 1, 0
    %v329 = vsel %vm229, 1, 0
    %v330 = vsel %vm230, 1, 0
    %v331 = vsel %vm231, 1, 0
    %v332 = vsel %vm232, 1, 0
    %v333 = vsel %vm233, 1, 0
    %v334 = vsel %vm234, 1, 0
    %v335 = vsel %vm235, 1, 0
    %v336 = vsel %vm236, 1, 0
    %v337 = vsel %vm237, 1, 0
    %v338 = vsel %vm238, 1, 0
    %v339 = vcvt.s32.f32 %v239
    %v340 = vcvt.s32.f32 %v240
    %v341 = vcvt.s32.f32 %v241
    %v342 = vcvt.s32.f32 %v242
    %v343 = vcvt.s32.f32 %v243
    %v344 = vcvt.s32.f32 %v244
    %v345 = vcvt.s32.f32 %v245
    %v346 = vcvt.s32.f32 %v246
    %v347 = vcvt.s32.f32 %v247
    %v348 = vcvt.s32.f32 %v248
    %v349 = vcvt.s32.f32 %v249
    %v350 = vcvt.s32.f32 %v250
    %v351 = vcvt.s32.f32 %v251
    %v352 = vcvt.s32.f32 %v252
    %v353 = vcvt.s32.f32 %v253
    %v354 = vcvt.s32.f32 %v254
    %v355 = vcvt.s32.f32 %v255
    %v356 = vcvt.s32.f32 %v256
    %v357 = vcvt.s32.f32 %v257
    %v358 = vcvt.s32.f32 %v258
    %v359 = vcvt.s32.f32 %v259
    %v360 = vcvt.s32.f32 %v260
    %v361 = vcvt.s32.f32 %v261
    %v362 = vcvt.s32.f32 %v262
    %v363 = vcvt.s32.f32 %v263
    %v364 = vcvt.s32.f32 %v264
    %v365 = vcvt.s32.f32 %v265
    %v366 = vcvt.s32.f32 %v266
    %v367 = vcvt.s32.f32 %v267
    %v368 = vcvt.s32.f32 %v268
    %v369 = vcvt.s32.f32 %v269
    %v370 = vcvt.s32.f32 %v270
    %v371 = vcvt.s32.f32 %v271
    %v372 = vcvt.s32.f32 %v272
    %v373 = vcvt.s32.f32 %v273
    %v374 = vcvt.s32.f32 %v274
    %v375 = vcvt.s32.f32 %v275
    %v376 = vcvt.s32.f32 %v276
    %v377 = vcvt.s32.f32 %v277
    %v378 = vcvt.s32.f32 %v278
    %v379 = vcvt.s32.f32 %v279
    %v380 = vcvt.s32.f32 %v280
    %v381 = vcvt.s32.f32 %v281
    %v382 = vcvt.s32.f32 %v282
    %v383 = vcvt.s32.f32 %v283
    %v384 = vcvt.s32.f32 %v284
    %v385 = vcvt.s32.f32 %v285
    %v386 = vcvt.s32.f32 %v286
    %v387 = vcvt.s32.f32 %v287
    %v388 = vcvt.s32.f32 %v288
    %v389 = vcvt.s32.f32 %v289
    %v390 = vcvt.s32.f32 %v290
    %v391 = vcvt.s32.f32 %v291
    %v392 = vcvt.s32.f32 %v292
    %v393 = vcvt.s32.f32 %v293
    %v394 = vcvt.s32.f32 %v294
    %v395 = vcvt.s32.f32 %v295
    %v396 = vcvt.s32.f32 %v296
    %v397 = vcvt.s32.f32 %v297
    %v398 = vcvt.s32.f32 %v298
    %v399 = vcvt.s32.f32 %v299
    %v400 = vcvt.s32.f32 %v300
    %v401 = vcvt.s32.f32 %v301
    %v402 = vcvt.s32.f32 %v302
    %v403 = vcvt.s32.f32 %v303
    %v404 = vcvt.s32.f32 %v304
    %v405 = vcvt.s32.f32 %v305
    %v406 = vcvt.s32.f32 %v306
    %v407 = vcvt.s32.f32 %v307
    %v408 = vcvt.s32.f32 %v308
    %v409 = vcvt.s32.f32 %v309
    %v410 = vcvt.s32.f32 %v310
    %v411 = vcvt.s32.f32 %v311
    %v412 = vcvt.s32.f32 %v312
    %v413 = vcvt.s32.f32 %v313
    %v414 = vcvt.s32.f32 %v314
    %v415 = vcvt.s32.f32 %v315
    %v416 = vcvt.s32.f32 %v316
    %v417 = vcvt.s32.f32 %v317
    %v418 = vcvt.s32.f32 %v318
    %v419 = vcvt.s32.f32 %v319
    %v420 = vcvt.s32.f32 %v320
    %v421 = vcvt.s32.f32 %v321
    %v422 = vcvt.s32.f32 %v322
    %v423 = vcvt.s32.f32 %v323
    %v424 = vcvt.s32.f32 %v324
    %v425 = vcvt.s32.f32 %v325
    %v426 = vcvt.s32.f32 %v326
    %v427 = vcvt.s32.f32 %v327
    %v428 = vcvt.s32.f32 %v328
    %v429 = vcvt.s32.f32 %v329
    %v430 = vcvt.s32.f32 %v330
    %v431 = vcvt.s32.f32 %v331
    %v432 = vcvt.s32.f32 %v332
    %v433 = vcvt.s32.f32 %v333
    %v434 = vcvt.s32.f32 %v334
    %v435 = vcvt.s32.f32 %v335
    %v436 = vcvt.s32.f32 %v336
    %v437 = vcvt.s32.f32 %v337
    %v438 = vcvt.s32.f32 %v338
    %v439 = vld [vmem:[%s0 + $0x1] sm:$0x1]
    %v440 = vlaneseq
    %v441 = vshrl.u32 %v440, 7
    %v442 = vsub.s32 0, %v441
    %v443 = vrot.slane %v439, %v442
    %vm444 = vcmp.eq.s32.totalorder %v34, %v443
    %vm445 = vcmp.eq.s32.totalorder %v35, %v443
    %vm446 = vcmp.eq.s32.totalorder %v36, %v443
    %vm447 = vcmp.eq.s32.totalorder %v37, %v443
    %vm448 = vcmp.eq.s32.totalorder %v38, %v443
    %vm449 = vcmp.eq.s32.totalorder %v39, %v443
    %vm450 = vcmp.eq.s32.totalorder %v40, %v443
    %vm451 = vcmp.eq.s32.totalorder %v41, %v443
    %vm452 = vcmp.eq.s32.totalorder %v42, %v443
    %vm453 = vcmp.eq.s32.totalorder %v43, %v443
    %vm454 = vcmp.eq.s32.totalorder %v44, %v443
    %vm455 = vcmp.eq.s32.totalorder %v45, %v443
    %vm456 = vcmp.eq.s32.totalorder %v46, %v443
    %vm457 = vcmp.eq.s32.totalorder %v47, %v443
    %vm458 = vcmp.eq.s32.totalorder %v48, %v443
    %vm459 = vcmp.eq.s32.totalorder %v49, %v443
    %vm460 = vcmp.eq.s32.totalorder %v50, %v443
    %vm461 = vcmp.eq.s32.totalorder %v51, %v443
    %vm462 = vcmp.eq.s32.totalorder %v52, %v443
    %vm463 = vcmp.eq.s32.totalorder %v53, %v443
    %vm464 = vcmp.eq.s32.totalorder %v54, %v443
    %vm465 = vcmp.eq.s32.totalorder %v55, %v443
    %vm466 = vcmp.eq.s32.totalorder %v56, %v443
    %vm467 = vcmp.eq.s32.totalorder %v57, %v443
    %vm468 = vcmp.eq.s32.totalorder %v58, %v443
    %vm469 = vcmp.eq.s32.totalorder %v59, %v443
    %vm470 = vcmp.eq.s32.totalorder %v60, %v443
    %vm471 = vcmp.eq.s32.totalorder %v61, %v443
    %vm472 = vcmp.eq.s32.totalorder %v62, %v443
    %vm473 = vcmp.eq.s32.totalorder %v63, %v443
    %vm474 = vcmp.eq.s32.totalorder %v64, %v443
    %vm475 = vcmp.eq.s32.totalorder %v65, %v443
    %vm476 = vcmp.eq.s32.totalorder %v66, %v443
    %vm477 = vcmp.eq.s32.totalorder %v67, %v443
    %vm478 = vcmp.eq.s32.totalorder %v68, %v443
    %vm479 = vcmp.eq.s32.totalorder %v69, %v443
    %vm480 = vcmp.eq.s32.totalorder %v70, %v443
    %vm481 = vcmp.eq.s32.totalorder %v71, %v443
    %vm482 = vcmp.eq.s32.totalorder %v72, %v443
    %vm483 = vcmp.eq.s32.totalorder %v73, %v443
    %vm484 = vcmp.eq.s32.totalorder %v74, %v443
    %vm485 = vcmp.eq.s32.totalorder %v75, %v443
    %vm486 = vcmp.eq.s32.totalorder %v76, %v443
    %vm487 = vcmp.eq.s32.totalorder %v77, %v443
    %vm488 = vcmp.eq.s32.totalorder %v78, %v443
    %vm489 = vcmp.eq.s32.totalorder %v79, %v443
    %vm490 = vcmp.eq.s32.totalorder %v80, %v443
    %vm491 = vcmp.eq.s32.totalorder %v81, %v443
    %vm492 = vcmp.eq.s32.totalorder %v82, %v443
    %vm493 = vcmp.eq.s32.totalorder %v83, %v443
    %vm494 = vcmp.eq.s32.totalorder %v84, %v443
    %vm495 = vcmp.eq.s32.totalorder %v85, %v443
    %vm496 = vcmp.eq.s32.totalorder %v86, %v443
    %vm497 = vcmp.eq.s32.totalorder %v87, %v443
    %vm498 = vcmp.eq.s32.totalorder %v88, %v443
    %vm499 = vcmp.eq.s32.totalorder %v89, %v443
    %vm500 = vcmp.eq.s32.totalorder %v90, %v443
    %vm501 = vcmp.eq.s32.totalorder %v91, %v443
    %vm502 = vcmp.eq.s32.totalorder %v92, %v443
    %vm503 = vcmp.eq.s32.totalorder %v93, %v443
    %vm504 = vcmp.eq.s32.totalorder %v94, %v443
    %vm505 = vcmp.eq.s32.totalorder %v95, %v443
    %vm506 = vcmp.eq.s32.totalorder %v96, %v443
    %vm507 = vcmp.eq.s32.totalorder %v97, %v443
    %vm508 = vcmp.eq.s32.totalorder %v98, %v443
    %vm509 = vcmp.eq.s32.totalorder %v99, %v443
    %vm510 = vcmp.eq.s32.totalorder %v100, %v443
    %vm511 = vcmp.eq.s32.totalorder %v101, %v443
    %vm512 = vcmp.eq.s32.totalorder %v102, %v443
    %vm513 = vcmp.eq.s32.totalorder %v103, %v443
    %vm514 = vcmp.eq.s32.totalorder %v104, %v443
    %vm515 = vcmp.eq.s32.totalorder %v105, %v443
    %vm516 = vcmp.eq.s32.totalorder %v106, %v443
    %vm517 = vcmp.eq.s32.totalorder %v107, %v443
    %vm518 = vcmp.eq.s32.totalorder %v108, %v443
    %vm519 = vcmp.eq.s32.totalorder %v109, %v443
    %vm520 = vcmp.eq.s32.totalorder %v110, %v443
    %vm521 = vcmp.eq.s32.totalorder %v111, %v443
    %vm522 = vcmp.eq.s32.totalorder %v112, %v443
    %vm523 = vcmp.eq.s32.totalorder %v113, %v443
    %vm524 = vcmp.eq.s32.totalorder %v114, %v443
    %vm525 = vcmp.eq.s32.totalorder %v115, %v443
    %vm526 = vcmp.eq.s32.totalorder %v116, %v443
    %vm527 = vcmp.eq.s32.totalorder %v117, %v443
    %vm528 = vcmp.eq.s32.totalorder %v118, %v443
    %vm529 = vcmp.eq.s32.totalorder %v119, %v443
    %vm530 = vcmp.eq.s32.totalorder %v120, %v443
    %vm531 = vcmp.eq.s32.totalorder %v121, %v443
    %vm532 = vcmp.eq.s32.totalorder %v122, %v443
    %vm533 = vcmp.eq.s32.totalorder %v123, %v443
    %vm534 = vcmp.eq.s32.totalorder %v124, %v443
    %vm535 = vcmp.eq.s32.totalorder %v125, %v443
    %vm536 = vcmp.eq.s32.totalorder %v126, %v443
    %vm537 = vcmp.eq.s32.totalorder %v127, %v443
    %vm538 = vcmp.eq.s32.totalorder %v128, %v443
    %vm539 = vcmp.eq.s32.totalorder %v129, %v443
    %vm540 = vcmp.eq.s32.totalorder %v130, %v443
    %vm541 = vcmp.eq.s32.totalorder %v131, %v443
    %vm542 = vcmp.eq.s32.totalorder %v132, %v443
    %vm543 = vcmp.eq.s32.totalorder %v133, %v443
    %v544 = vsel %vm444, 1, 0
    %v545 = vsel %vm445, 1, 0
    %v546 = vsel %vm446, 1, 0
    %v547 = vsel %vm447, 1, 0
    %v548 = vsel %vm448, 1, 0
    %v549 = vsel %vm449, 1, 0
    %v550 = vsel %vm450, 1, 0
    %v551 = vsel %vm451, 1, 0
    %v552 = vsel %vm452, 1, 0
    %v553 = vsel %vm453, 1, 0
    %v554 = vsel %vm454, 1, 0
    %v555 = vsel %vm455, 1, 0
    %v556 = vsel %vm456, 1, 0
    %v557 = vsel %vm457, 1, 0
    %v558 = vsel %vm458, 1, 0
    %v559 = vsel %vm459, 1, 0
    %v560 = vsel %vm460, 1, 0
    %v561 = vsel %vm461, 1, 0
    %v562 = vsel %vm462, 1, 0
    %v563 = vsel %vm463, 1, 0
    %v564 = vsel %vm464, 1, 0
    %v565 = vsel %vm465, 1, 0
    %v566 = vsel %vm466, 1, 0
    %v567 = vsel %vm467, 1, 0
    %v568 = vsel %vm468, 1, 0
    %v569 = vsel %vm469, 1, 0
    %v570 = vsel %vm470, 1, 0
    %v571 = vsel %vm471, 1, 0
    %v572 = vsel %vm472, 1, 0
    %v573 = vsel %vm473, 1, 0
    %v574 = vsel %vm474, 1, 0
    %v575 = vsel %vm475, 1, 0
    %v576 = vsel %vm476, 1, 0
    %v577 = vsel %vm477, 1, 0
    %v578 = vsel %vm478, 1, 0
    %v579 = vsel %vm479, 1, 0
    %v580 = vsel %vm480, 1, 0
    %v581 = vsel %vm481, 1, 0
    %v582 = vsel %vm482, 1, 0
    %v583 = vsel %vm483, 1, 0
    %v584 = vsel %vm484, 1, 0
    %v585 = vsel %vm485, 1, 0
    %v586 = vsel %vm486, 1, 0
    %v587 = vsel %vm487, 1, 0
    %v588 = vsel %vm488, 1, 0
    %v589 = vsel %vm489, 1, 0
    %v590 = vsel %vm490, 1, 0
    %v591 = vsel %vm491, 1, 0
    %v592 = vsel %vm492, 1, 0
    %v593 = vsel %vm493, 1, 0
    %v594 = vsel %vm494, 1, 0
    %v595 = vsel %vm495, 1, 0
    %v596 = vsel %vm496, 1, 0
    %v597 = vsel %vm497, 1, 0
    %v598 = vsel %vm498, 1, 0
    %v599 = vsel %vm499, 1, 0
    %v600 = vsel %vm500, 1, 0
    %v601 = vsel %vm501, 1, 0
    %v602 = vsel %vm502, 1, 0
    %v603 = vsel %vm503, 1, 0
    %v604 = vsel %vm504, 1, 0
    %v605 = vsel %vm505, 1, 0
    %v606 = vsel %vm506, 1, 0
    %v607 = vsel %vm507, 1, 0
    %v608 = vsel %vm508, 1, 0
    %v609 = vsel %vm509, 1, 0
    %v610 = vsel %vm510, 1, 0
    %v611 = vsel %vm511, 1, 0
    %v612 = vsel %vm512, 1, 0
    %v613 = vsel %vm513, 1, 0
    %v614 = vsel %vm514, 1, 0
    %v615 = vsel %vm515, 1, 0
    %v616 = vsel %vm516, 1, 0
    %v617 = vsel %vm517, 1, 0
    %v618 = vsel %vm518, 1, 0
    %v619 = vsel %vm519, 1, 0
    %v620 = vsel %vm520, 1, 0
    %v621 = vsel %vm521, 1, 0
    %v622 = vsel %vm522, 1, 0
    %v623 = vsel %vm523, 1, 0
    %v624 = vsel %vm524, 1, 0
    %v625 = vsel %vm525, 1, 0
    %v626 = vsel %vm526, 1, 0
    %v627 = vsel %vm527, 1, 0
    %v628 = vsel %vm528, 1, 0
    %v629 = vsel %vm529, 1, 0
    %v630 = vsel %vm530, 1, 0
    %v631 = vsel %vm531, 1, 0
    %v632 = vsel %vm532, 1, 0
    %v633 = vsel %vm533, 1, 0
    %v634 = vsel %vm534, 1, 0
    %v635 = vsel %vm535, 1, 0
    %v636 = vsel %vm536, 1, 0
    %v637 = vsel %vm537, 1, 0
    %v638 = vsel %vm538, 1, 0
    %v639 = vsel %vm539, 1, 0
    %v640 = vsel %vm540, 1, 0
    %v641 = vsel %vm541, 1, 0
    %v642 = vsel %vm542, 1, 0
    %v643 = vsel %vm543, 1, 0
    %v644 = vcvt.s32.f32 %v544
    %v645 = vcvt.s32.f32 %v545
    %v646 = vcvt.s32.f32 %v546
    %v647 = vcvt.s32.f32 %v547
    %v648 = vcvt.s32.f32 %v548
    %v649 = vcvt.s32.f32 %v549
    %v650 = vcvt.s32.f32 %v550
    %v651 = vcvt.s32.f32 %v551
    %v652 = vcvt.s32.f32 %v552
    %v653 = vcvt.s32.f32 %v553
    %v654 = vcvt.s32.f32 %v554
    %v655 = vcvt.s32.f32 %v555
    %v656 = vcvt.s32.f32 %v556
    %v657 = vcvt.s32.f32 %v557
    %v658 = vcvt.s32.f32 %v558
    %v659 = vcvt.s32.f32 %v559
    %v660 = vcvt.s32.f32 %v560
    %v661 = vcvt.s32.f32 %v561
    %v662 = vcvt.s32.f32 %v562
    %v663 = vcvt.s32.f32 %v563
    %v664 = vcvt.s32.f32 %v564
    %v665 = vcvt.s32.f32 %v565
    %v666 = vcvt.s32.f32 %v566
    %v667 = vcvt.s32.f32 %v567
    %v668 = vcvt.s32.f32 %v568
    %v669 = vcvt.s32.f32 %v569
    %v670 = vcvt.s32.f32 %v570
    %v671 = vcvt.s32.f32 %v571
    %v672 = vcvt.s32.f32 %v572
    %v673 = vcvt.s32.f32 %v573
    %v674 = vcvt.s32.f32 %v574
    %v675 = vcvt.s32.f32 %v575
    %v676 = vcvt.s32.f32 %v576
    %v677 = vcvt.s32.f32 %v577
    %v678 = vcvt.s32.f32 %v578
    %v679 = vcvt.s32.f32 %v579
    %v680 = vcvt.s32.f32 %v580
    %v681 = vcvt.s32.f32 %v581
    %v682 = vcvt.s32.f32 %v582
    %v683 = vcvt.s32.f32 %v583
    %v684 = vcvt.s32.f32 %v584
    %v685 = vcvt.s32.f32 %v585
    %v686 = vcvt.s32.f32 %v586
    %v687 = vcvt.s32.f32 %v587
    %v688 = vcvt.s32.f32 %v588
    %v689 = vcvt.s32.f32 %v589
    %v690 = vcvt.s32.f32 %v590
    %v691 = vcvt.s32.f32 %v591
    %v692 = vcvt.s32.f32 %v592
    %v693 = vcvt.s32.f32 %v593
    %v694 = vcvt.s32.f32 %v594
    %v695 = vcvt.s32.f32 %v595
    %v696 = vcvt.s32.f32 %v596
    %v697 = vcvt.s32.f32 %v597
    %v698 = vcvt.s32.f32 %v598
    %v699 = vcvt.s32.f32 %v599
    %v700 = vcvt.s32.f32 %v600
    %v701 = vcvt.s32.f32 %v601
    %v702 = vcvt.s32.f32 %v602
    %v703 = vcvt.s32.f32 %v603
    %v704 = vcvt.s32.f32 %v604
    %v705 = vcvt.s32.f32 %v605
    %v706 = vcvt.s32.f32 %v606
    %v707 = vcvt.s32.f32 %v607
    %v708 = vcvt.s32.f32 %v608
    %v709 = vcvt.s32.f32 %v609
    %v710 = vcvt.s32.f32 %v610
    %v711 = vcvt.s32.f32 %v611
    %v712 = vcvt.s32.f32 %v612
    %v713 = vcvt.s32.f32 %v613
    %v714 = vcvt.s32.f32 %v614
    %v715 = vcvt.s32.f32 %v615
    %v716 = vcvt.s32.f32 %v616
    %v717 = vcvt.s32.f32 %v617
    %v718 = vcvt.s32.f32 %v618
    %v719 = vcvt.s32.f32 %v619
    %v720 = vcvt.s32.f32 %v620
    %v721 = vcvt.s32.f32 %v621
    %v722 = vcvt.s32.f32 %v622
    %v723 = vcvt.s32.f32 %v623
    %v724 = vcvt.s32.f32 %v624
    %v725 = vcvt.s32.f32 %v625
    %v726 = vcvt.s32.f32 %v626
    %v727 = vcvt.s32.f32 %v627
    %v728 = vcvt.s32.f32 %v628
    %v729 = vcvt.s32.f32 %v629
    %v730 = vcvt.s32.f32 %v630
    %v731 = vcvt.s32.f32 %v631
    %v732 = vcvt.s32.f32 %v632
    %v733 = vcvt.s32.f32 %v633
    %v734 = vcvt.s32.f32 %v634
    %v735 = vcvt.s32.f32 %v635
    %v736 = vcvt.s32.f32 %v636
    %v737 = vcvt.s32.f32 %v637
    %v738 = vcvt.s32.f32 %v638
    %v739 = vcvt.s32.f32 %v639
    %v740 = vcvt.s32.f32 %v640
    %v741 = vcvt.s32.f32 %v641
    %v742 = vcvt.s32.f32 %v642
    %v743 = vcvt.s32.f32 %v643
    %v744 = vld [vmem:[#allocation3] sm:$0xff]
    %v745 = vld [vmem:[#allocation3 + $0x8] sm:$0xff]
    %v746 = vld [vmem:[#allocation3 + $0x10] sm:$0xff]
    %v747 = vld [vmem:[#allocation3 + $0x18] sm:$0xff]
    %v748 = vld [vmem:[#allocation3 + $0x20] sm:$0xff]
    %v749 = vld [vmem:[#allocation3 + $0x28] sm:$0xff]
    %v750 = vld [vmem:[#allocation3 + $0x30] sm:$0xff]
    %v751 = vld [vmem:[#allocation3 + $0x38] sm:$0xff]
    %v752 = vld [vmem:[#allocation3 + $0x40] sm:$0xff]
    %v753 = vld [vmem:[#allocation3 + $0x48] sm:$0xff]
    %v754 = vld [vmem:[#allocation3 + $0x50] sm:$0xff]
    %v755 = vld [vmem:[#allocation3 + $0x58] sm:$0xff]
    %v756 = vld [vmem:[#allocation3 + $0x60] sm:$0xff]
    %v757 = vld [vmem:[#allocation3 + $0x68] sm:$0xff]
    %v758 = vld [vmem:[#allocation3 + $0x70] sm:$0xff]
    %v759 = vld [vmem:[#allocation3 + $0x78] sm:$0xff]
    %v760 = vld [vmem:[#allocation3 + $0x80] sm:$0xff]
    %v761 = vld [vmem:[#allocation3 + $0x88] sm:$0xff]
    %v762 = vld [vmem:[#allocation3 + $0x90] sm:$0xff]
    %v763 = vld [vmem:[#allocation3 + $0x98] sm:$0xff]
    %v764 = vld [vmem:[#allocation3 + $0xa0] sm:$0xff]
    %v765 = vld [vmem:[#allocation3 + $0xa8] sm:$0xff]
    %v766 = vld [vmem:[#allocation3 + $0xb0] sm:$0xff]
    %v767 = vld [vmem:[#allocation3 + $0xb8] sm:$0xff]
    %v768 = vld [vmem:[#allocation3 + $0xc0] sm:$0xff]
    %v769 = vld [vmem:[#allocation3 + $0xc8] sm:$0xff]
    %v770 = vld [vmem:[#allocation3 + $0xd0] sm:$0xff]
    %v771 = vld [vmem:[#allocation3 + $0xd8] sm:$0xff]
    %vm772 = vcmask 261120
    %v774 = vsel %vm772, %v750, 0
    %v777 = vsel %vm772, %v757, 0
    %v780 = vsel %vm772, %v764, 0
    %v783 = vsel %vm772, %v771, 0
    %785 = vmatprep.subr.mxu0 0.0
    %786 = vmatpush1.msra.mxu0 %v354
    %787 = vmatprep.subr.mxu0 0.0
    %788 = vmatpush1.msra.mxu0 %v353
    %789 = vmatprep.subr.mxu0 0.0
    %790 = vmatpush1.msra.mxu0 %v352
    %791 = vmatprep.subr.mxu0 0.0
    %792 = vmatpush1.msra.mxu0 %v351
    %793 = vmatprep.subr.mxu0 0.0
    %794 = vmatpush1.msra.mxu0 %v350
    %795 = vmatprep.subr.mxu0 0.0
    %796 = vmatpush1.msra.mxu0 %v349
    %797 = vmatprep.subr.mxu0 0.0
    %798 = vmatpush1.msra.mxu0 %v348
    %799 = vmatprep.subr.mxu0 0.0
    %800 = vmatpush1.msra.mxu0 %v347
    %801 = vmatprep.subr.mxu0 0.0
    %802 = vmatpush1.msra.mxu0 %v346
    %803 = vmatprep.subr.mxu0 0.0
    %804 = vmatpush1.msra.mxu0 %v345
    %805 = vmatprep.subr.mxu0 0.0
    %806 = vmatpush1.msra.mxu0 %v344
    %807 = vmatprep.subr.mxu0 0.0
    %808 = vmatpush1.msra.mxu0 %v343
    %809 = vmatprep.subr.mxu0 0.0
    %810 = vmatpush1.msra.mxu0 %v342
    %811 = vmatprep.subr.mxu0 0.0
    %812 = vmatpush1.msra.mxu0 %v341
    %813 = vmatprep.subr.mxu0 0.0
    %814 = vmatpush1.msra.mxu0 %v340
    %815 = vmatprep.subr.mxu0 0.0
    %816 = vmatpush1.msra.mxu0 %v339
    %817 = vmatprep.subr.mxu0 0.0
    %818 = vmatpush2.msra.mxu0 %v370
    %819 = vmatprep.subr.mxu0 0.0
    %820 = vmatpush2.msra.mxu0 %v369
    %821 = vmatprep.subr.mxu0 0.0
    %822 = vmatpush2.msra.mxu0 %v368
    %823 = vmatprep.subr.mxu0 0.0
    %824 = vmatpush2.msra.mxu0 %v367
    %825 = vmatprep.subr.mxu0 0.0
    %826 = vmatpush2.msra.mxu0 %v366
    %827 = vmatprep.subr.mxu0 0.0
    %828 = vmatpush2.msra.mxu0 %v365
    %829 = vmatprep.subr.mxu0 0.0
    %830 = vmatpush2.msra.mxu0 %v364
    %831 = vmatprep.subr.mxu0 0.0
    %832 = vmatpush2.msra.mxu0 %v363
    %833 = vmatprep.subr.mxu0 0.0
    %834 = vmatpush2.msra.mxu0 %v362
    %835 = vmatprep.subr.mxu0 0.0
    %836 = vmatpush2.msra.mxu0 %v361
    %837 = vmatprep.subr.mxu0 0.0
    %838 = vmatpush2.msra.mxu0 %v360
    %839 = vmatprep.subr.mxu0 0.0
    %840 = vmatpush2.msra.mxu0 %v359
    %841 = vmatprep.subr.mxu0 0.0
    %842 = vmatpush2.msra.mxu0 %v358
    %843 = vmatprep.subr.mxu0 0.0
    %844 = vmatpush2.msra.mxu0 %v357
    %845 = vmatprep.subr.mxu0 0.0
    %846 = vmatpush2.msra.mxu0 %v356
    %847 = vmatprep.subr.mxu0 0.0
    %848 = vmatpush2.msra.mxu0 %v355
    %849 = vmatprep.mubr.f32.mxu0 %v745
    %850 = vmatmul.mubr.f32.gmra.mxu0 %v744
    %v851 = vpop.f32.mrf.mxu0
    %v852 = vadd.f32 0.0, %v851
    %v853 = vpop.f32.mrf.mxu0
    %854 = vmatprep.mubr.f32.mxu0 %v752
    %855 = vmatmul.mubr.f32.gmra.mxu0 %v751
    %v856 = vpop.f32.mrf.mxu0
    %v857 = vadd.f32 0.0, %v856
    %v858 = vpop.f32.mrf.mxu0
    %859 = vmatprep.mubr.f32.mxu0 %v759
    %860 = vmatmul.mubr.f32.gmra.mxu0 %v758
    %v861 = vpop.f32.mrf.mxu0
    %v862 = vadd.f32 0.0, %v861
    %v863 = vpop.f32.mrf.mxu0
    %864 = vmatprep.mubr.f32.mxu0 %v766
    %865 = vmatmul.mubr.f32.gmra.mxu0 %v765
    %v866 = vpop.f32.mrf.mxu0
    %v867 = vadd.f32 0.0, %v866
    %v868 = vpop.f32.mrf.mxu0
    %869 = vdwg.mxu0
    %870 = vmatprep.subr.mxu0 0.0
    %871 = vmatpush1.msra.mxu0 %v386
    %872 = vmatprep.subr.mxu0 0.0
    %873 = vmatpush1.msra.mxu0 %v385
    %874 = vmatprep.subr.mxu0 0.0
    %875 = vmatpush1.msra.mxu0 %v384
    %876 = vmatprep.subr.mxu0 0.0
    %877 = vmatpush1.msra.mxu0 %v383
    %878 = vmatprep.subr.mxu0 0.0
    %879 = vmatpush1.msra.mxu0 %v382
    %880 = vmatprep.subr.mxu0 0.0
    %881 = vmatpush1.msra.mxu0 %v381
    %882 = vmatprep.subr.mxu0 0.0
    %883 = vmatpush1.msra.mxu0 %v380
    %884 = vmatprep.subr.mxu0 0.0
    %885 = vmatpush1.msra.mxu0 %v379
    %886 = vmatprep.subr.mxu0 0.0
    %887 = vmatpush1.msra.mxu0 %v378
    %888 = vmatprep.subr.mxu0 0.0
    %889 = vmatpush1.msra.mxu0 %v377
    %890 = vmatprep.subr.mxu0 0.0
    %891 = vmatpush1.msra.mxu0 %v376
    %892 = vmatprep.subr.mxu0 0.0
    %893 = vmatpush1.msra.mxu0 %v375
    %894 = vmatprep.subr.mxu0 0.0
    %895 = vmatpush1.msra.mxu0 %v374
    %896 = vmatprep.subr.mxu0 0.0
    %897 = vmatpush1.msra.mxu0 %v373
    %898 = vmatprep.subr.mxu0 0.0
    %899 = vmatpush1.msra.mxu0 %v372
    %900 = vmatprep.subr.mxu0 0.0
    %901 = vmatpush1.msra.mxu0 %v371
    %902 = vmatprep.subr.mxu0 0.0
    %903 = vmatpush2.msra.mxu0 %v402
    %904 = vmatprep.subr.mxu0 0.0
    %905 = vmatpush2.msra.mxu0 %v401
    %906 = vmatprep.subr.mxu0 0.0
    %907 = vmatpush2.msra.mxu0 %v400
    %908 = vmatprep.subr.mxu0 0.0
    %909 = vmatpush2.msra.mxu0 %v399
    %910 = vmatprep.subr.mxu0 0.0
    %911 = vmatpush2.msra.mxu0 %v398
    %912 = vmatprep.subr.mxu0 0.0
    %913 = vmatpush2.msra.mxu0 %v397
    %914 = vmatprep.subr.mxu0 0.0
    %915 = vmatpush2.msra.mxu0 %v396
    %916 = vmatprep.subr.mxu0 0.0
    %917 = vmatpush2.msra.mxu0 %v395
    %918 = vmatprep.subr.mxu0 0.0
    %919 = vmatpush2.msra.mxu0 %v394
    %920 = vmatprep.subr.mxu0 0.0
    %921 = vmatpush2.msra.mxu0 %v393
    %922 = vmatprep.subr.mxu0 0.0
    %923 = vmatpush2.msra.mxu0 %v392
    %924 = vmatprep.subr.mxu0 0.0
    %925 = vmatpush2.msra.mxu0 %v391
    %926 = vmatprep.subr.mxu0 0.0
    %927 = vmatpush2.msra.mxu0 %v390
    %928 = vmatprep.subr.mxu0 0.0
    %929 = vmatpush2.msra.mxu0 %v389
    %930 = vmatprep.subr.mxu0 0.0
    %931 = vmatpush2.msra.mxu0 %v388
    %932 = vmatprep.subr.mxu0 0.0
    %933 = vmatpush2.msra.mxu0 %v387
    %934 = vmatprep.mubr.f32.mxu0 %v747
    %935 = vmatmul.mubr.f32.gmra.mxu0 %v746
    %v936 = vpop.f32.mrf.mxu0
    %v937 = vadd.f32 %v852, %v936
    %v938 = vpop.f32.mrf.mxu0
    %939 = vmatprep.mubr.f32.mxu0 %v754
    %940 = vmatmul.mubr.f32.gmra.mxu0 %v753
    %v941 = vpop.f32.mrf.mxu0
    %v942 = vadd.f32 %v857, %v941
    %v943 = vpop.f32.mrf.mxu0
    %944 = vmatprep.mubr.f32.mxu0 %v761
    %945 = vmatmul.mubr.f32.gmra.mxu0 %v760
    %v946 = vpop.f32.mrf.mxu0
    %v947 = vadd.f32 %v862, %v946
    %v948 = vpop.f32.mrf.mxu0
    %949 = vmatprep.mubr.f32.mxu0 %v768
    %950 = vmatmul.mubr.f32.gmra.mxu0 %v767
    %v951 = vpop.f32.mrf.mxu0
    %v952 = vadd.f32 %v867, %v951
    %v953 = vpop.f32.mrf.mxu0
    %954 = vdwg.mxu0
    %955 = vmatprep.subr.mxu0 0.0
    %956 = vmatpush1.msra.mxu0 %v418
    %957 = vmatprep.subr.mxu0 0.0
    %958 = vmatpush1.msra.mxu0 %v417
    %959 = vmatprep.subr.mxu0 0.0
    %960 = vmatpush1.msra.mxu0 %v416
    %961 = vmatprep.subr.mxu0 0.0
    %962 = vmatpush1.msra.mxu0 %v415
    %963 = vmatprep.subr.mxu0 0.0
    %964 = vmatpush1.msra.mxu0 %v414
    %965 = vmatprep.subr.mxu0 0.0
    %966 = vmatpush1.msra.mxu0 %v413
    %967 = vmatprep.subr.mxu0 0.0
    %968 = vmatpush1.msra.mxu0 %v412
    %969 = vmatprep.subr.mxu0 0.0
    %970 = vmatpush1.msra.mxu0 %v411
    %971 = vmatprep.subr.mxu0 0.0
    %972 = vmatpush1.msra.mxu0 %v410
    %973 = vmatprep.subr.mxu0 0.0
    %974 = vmatpush1.msra.mxu0 %v409
    %975 = vmatprep.subr.mxu0 0.0
    %976 = vmatpush1.msra.mxu0 %v408
    %977 = vmatprep.subr.mxu0 0.0
    %978 = vmatpush1.msra.mxu0 %v407
    %979 = vmatprep.subr.mxu0 0.0
    %980 = vmatpush1.msra.mxu0 %v406
    %981 = vmatprep.subr.mxu0 0.0
    %982 = vmatpush1.msra.mxu0 %v405
    %983 = vmatprep.subr.mxu0 0.0
    %984 = vmatpush1.msra.mxu0 %v404
    %985 = vmatprep.subr.mxu0 0.0
    %986 = vmatpush1.msra.mxu0 %v403
    %987 = vmatprep.subr.mxu0 0.0
    %988 = vmatpush2.msra.mxu0 %v434
    %989 = vmatprep.subr.mxu0 0.0
    %990 = vmatpush2.msra.mxu0 %v433
    %991 = vmatprep.subr.mxu0 0.0
    %992 = vmatpush2.msra.mxu0 %v432
    %993 = vmatprep.subr.mxu0 0.0
    %994 = vmatpush2.msra.mxu0 %v431
    %995 = vmatprep.subr.mxu0 0.0
    %996 = vmatpush2.msra.mxu0 %v430
    %997 = vmatprep.subr.mxu0 0.0
    %998 = vmatpush2.msra.mxu0 %v429
    %999 = vmatprep.subr.mxu0 0.0
    %1000 = vmatpush2.msra.mxu0 %v428
    %1001 = vmatprep.subr.mxu0 0.0
    %1002 = vmatpush2.msra.mxu0 %v427
    %1003 = vmatprep.subr.mxu0 0.0
    %1004 = vmatpush2.msra.mxu0 %v426
    %1005 = vmatprep.subr.mxu0 0.0
    %1006 = vmatpush2.msra.mxu0 %v425
    %1007 = vmatprep.subr.mxu0 0.0
    %1008 = vmatpush2.msra.mxu0 %v424
    %1009 = vmatprep.subr.mxu0 0.0
    %1010 = vmatpush2.msra.mxu0 %v423
    %1011 = vmatprep.subr.mxu0 0.0
    %1012 = vmatpush2.msra.mxu0 %v422
    %1013 = vmatprep.subr.mxu0 0.0
    %1014 = vmatpush2.msra.mxu0 %v421
    %1015 = vmatprep.subr.mxu0 0.0
    %1016 = vmatpush2.msra.mxu0 %v420
    %1017 = vmatprep.subr.mxu0 0.0
    %1018 = vmatpush2.msra.mxu0 %v419
    %1019 = vmatprep.mubr.f32.mxu0 %v749
    %1020 = vmatmul.mubr.f32.gmra.mxu0 %v748
    %v1021 = vpop.f32.mrf.mxu0
    %v1022 = vadd.f32 %v937, %v1021
    %v1023 = vpop.f32.mrf.mxu0
    %1024 = vmatprep.mubr.f32.mxu0 %v756
    %1025 = vmatmul.mubr.f32.gmra.mxu0 %v755
    %v1026 = vpop.f32.mrf.mxu0
    %v1027 = vadd.f32 %v942, %v1026
    %v1028 = vpop.f32.mrf.mxu0
    %1029 = vmatprep.mubr.f32.mxu0 %v763
    %1030 = vmatmul.mubr.f32.gmra.mxu0 %v762
    %v1031 = vpop.f32.mrf.mxu0
    %v1032 = vadd.f32 %v947, %v1031
    %v1033 = vpop.f32.mrf.mxu0
    %1034 = vmatprep.mubr.f32.mxu0 %v770
    %1035 = vmatmul.mubr.f32.gmra.mxu0 %v769
    %v1036 = vpop.f32.mrf.mxu0
    %v1037 = vadd.f32 %v952, %v1036
    %v1038 = vpop.f32.mrf.mxu0
    %1039 = vdwg.mxu0
    %1040 = vmatprep.subr.mxu0 0.0
    %1041 = vmatpush1.msra.mxu0 0.0
    %1042 = vmatprep.subr.mxu0 0.0
    %1043 = vmatpush1.msra.mxu0 0.0
    %1044 = vmatprep.subr.mxu0 0.0
    %1045 = vmatpush1.msra.mxu0 0.0
    %1046 = vmatprep.subr.mxu0 0.0
    %1047 = vmatpush1.msra.mxu0 0.0
    %1048 = vmatprep.subr.mxu0 0.0
    %1049 = vmatpush1.msra.mxu0 0.0
    %1050 = vmatprep.subr.mxu0 0.0
    %1051 = vmatpush1.msra.mxu0 0.0
    %1052 = vmatprep.subr.mxu0 0.0
    %1053 = vmatpush1.msra.mxu0 0.0
    %1054 = vmatprep.subr.mxu0 0.0
    %1055 = vmatpush1.msra.mxu0 0.0
    %1056 = vmatprep.subr.mxu0 0.0
    %1057 = vmatpush1.msra.mxu0 0.0
    %1058 = vmatprep.subr.mxu0 0.0
    %1059 = vmatpush1.msra.mxu0 0.0
    %1060 = vmatprep.subr.mxu0 0.0
    %1061 = vmatpush1.msra.mxu0 0.0
    %1062 = vmatprep.subr.mxu0 0.0
    %1063 = vmatpush1.msra.mxu0 0.0
    %1064 = vmatprep.subr.mxu0 0.0
    %1065 = vmatpush1.msra.mxu0 %v438
    %1066 = vmatprep.subr.mxu0 0.0
    %1067 = vmatpush1.msra.mxu0 %v437
    %1068 = vmatprep.subr.mxu0 0.0
    %1069 = vmatpush1.msra.mxu0 %v436
    %1070 = vmatprep.subr.mxu0 0.0
    %1071 = vmatpush1.msra.mxu0 %v435
    %1072 = vmatprep.subr.mxu0 0.0
    %1073 = vmatpush2.msra.mxu0 0.0
    %1074 = vmatprep.subr.mxu0 0.0
    %1075 = vmatpush2.msra.mxu0 0.0
    %1076 = vmatprep.subr.mxu0 0.0
    %1077 = vmatpush2.msra.mxu0 0.0
    %1078 = vmatprep.subr.mxu0 0.0
    %1079 = vmatpush2.msra.mxu0 0.0
    %1080 = vmatprep.subr.mxu0 0.0
    %1081 = vmatpush2.msra.mxu0 0.0
    %1082 = vmatprep.subr.mxu0 0.0
    %1083 = vmatpush2.msra.mxu0 0.0
    %1084 = vmatprep.subr.mxu0 0.0
    %1085 = vmatpush2.msra.mxu0 0.0
    %1086 = vmatprep.subr.mxu0 0.0
    %1087 = vmatpush2.msra.mxu0 0.0
    %1088 = vmatprep.subr.mxu0 0.0
    %1089 = vmatpush2.msra.mxu0 0.0
    %1090 = vmatprep.subr.mxu0 0.0
    %1091 = vmatpush2.msra.mxu0 0.0
    %1092 = vmatprep.subr.mxu0 0.0
    %1093 = vmatpush2.msra.mxu0 0.0
    %1094 = vmatprep.subr.mxu0 0.0
    %1095 = vmatpush2.msra.mxu0 0.0
    %1096 = vmatprep.subr.mxu0 0.0
    %1097 = vmatpush2.msra.mxu0 0.0
    %1098 = vmatprep.subr.mxu0 0.0
    %1099 = vmatpush2.msra.mxu0 0.0
    %1100 = vmatprep.subr.mxu0 0.0
    %1101 = vmatpush2.msra.mxu0 0.0
    %1102 = vmatprep.subr.mxu0 0.0
    %1103 = vmatpush2.msra.mxu0 0.0
    %1104 = vmatprep.mubr.f32.mxu0 0.0
    %1105 = vmatmul.mubr.f32.gmra.mxu0 %v774
    %v1106 = vpop.f32.mrf.mxu0
    %v1107 = vadd.f32 %v1022, %v1106
    %v1108 = vpop.f32.mrf.mxu0
    %1109 = vmatprep.mubr.f32.mxu0 0.0
    %1110 = vmatmul.mubr.f32.gmra.mxu0 %v777
    %v1111 = vpop.f32.mrf.mxu0
    %v1112 = vadd.f32 %v1027, %v1111
    %v1113 = vpop.f32.mrf.mxu0
    %1114 = vmatprep.mubr.f32.mxu0 0.0
    %1115 = vmatmul.mubr.f32.gmra.mxu0 %v780
    %v1116 = vpop.f32.mrf.mxu0
    %v1117 = vadd.f32 %v1032, %v1116
    %v1118 = vpop.f32.mrf.mxu0
    %1119 = vmatprep.mubr.f32.mxu0 0.0
    %1120 = vmatmul.mubr.f32.gmra.mxu0 %v783
    %v1121 = vpop.f32.mrf.mxu0
    %v1122 = vadd.f32 %v1037, %v1121
    %v1123 = vpop.f32.mrf.mxu0
    %1124 = vdwg.mxu0
    %1125 = vmatprep.subr.mxu0 0.0
    %1126 = vmatpush1.msra.mxu0 %v659
    %1127 = vmatprep.subr.mxu0 0.0
    %1128 = vmatpush1.msra.mxu0 %v658
    %1129 = vmatprep.subr.mxu0 0.0
    %1130 = vmatpush1.msra.mxu0 %v657
    %1131 = vmatprep.subr.mxu0 0.0
    %1132 = vmatpush1.msra.mxu0 %v656
    %1133 = vmatprep.subr.mxu0 0.0
    %1134 = vmatpush1.msra.mxu0 %v655
    %1135 = vmatprep.subr.mxu0 0.0
    %1136 = vmatpush1.msra.mxu0 %v654
    %1137 = vmatprep.subr.mxu0 0.0
    %1138 = vmatpush1.msra.mxu0 %v653
    %1139 = vmatprep.subr.mxu0 0.0
    %1140 = vmatpush1.msra.mxu0 %v652
    %1141 = vmatprep.subr.mxu0 0.0
    %1142 = vmatpush1.msra.mxu0 %v651
    %1143 = vmatprep.subr.mxu0 0.0
    %1144 = vmatpush1.msra.mxu0 %v650
    %1145 = vmatprep.subr.mxu0 0.0
    %1146 = vmatpush1.msra.mxu0 %v649
    %1147 = vmatprep.subr.mxu0 0.0
    %1148 = vmatpush1.msra.mxu0 %v648
    %1149 = vmatprep.subr.mxu0 0.0
    %1150 = vmatpush1.msra.mxu0 %v647
    %1151 = vmatprep.subr.mxu0 0.0
    %1152 = vmatpush1.msra.mxu0 %v646
    %1153 = vmatprep.subr.mxu0 0.0
    %1154 = vmatpush1.msra.mxu0 %v645
    %1155 = vmatprep.subr.mxu0 0.0
    %1156 = vmatpush1.msra.mxu0 %v644
    %1157 = vmatprep.subr.mxu0 0.0
    %1158 = vmatpush2.msra.mxu0 %v675
    %1159 = vmatprep.subr.mxu0 0.0
    %1160 = vmatpush2.msra.mxu0 %v674
    %1161 = vmatprep.subr.mxu0 0.0
    %1162 = vmatpush2.msra.mxu0 %v673
    %1163 = vmatprep.subr.mxu0 0.0
    %1164 = vmatpush2.msra.mxu0 %v672
    %1165 = vmatprep.subr.mxu0 0.0
    %1166 = vmatpush2.msra.mxu0 %v671
    %1167 = vmatprep.subr.mxu0 0.0
    %1168 = vmatpush2.msra.mxu0 %v670
    %1169 = vmatprep.subr.mxu0 0.0
    %1170 = vmatpush2.msra.mxu0 %v669
    %1171 = vmatprep.subr.mxu0 0.0
    %1172 = vmatpush2.msra.mxu0 %v668
    %1173 = vmatprep.subr.mxu0 0.0
    %1174 = vmatpush2.msra.mxu0 %v667
    %1175 = vmatprep.subr.mxu0 0.0
    %1176 = vmatpush2.msra.mxu0 %v666
    %1177 = vmatprep.subr.mxu0 0.0
    %1178 = vmatpush2.msra.mxu0 %v665
    %1179 = vmatprep.subr.mxu0 0.0
    %1180 = vmatpush2.msra.mxu0 %v664
    %1181 = vmatprep.subr.mxu0 0.0
    %1182 = vmatpush2.msra.mxu0 %v663
    %1183 = vmatprep.subr.mxu0 0.0
    %1184 = vmatpush2.msra.mxu0 %v662
    %1185 = vmatprep.subr.mxu0 0.0
    %1186 = vmatpush2.msra.mxu0 %v661
    %1187 = vmatprep.subr.mxu0 0.0
    %1188 = vmatpush2.msra.mxu0 %v660
    %1189 = vmatprep.mubr.f32.mxu0 %v745
    %1190 = vmatmul.mubr.f32.gmra.mxu0 %v744
    %v1191 = vpop.f32.mrf.mxu0
    %v1192 = vadd.f32 0.0, %v1191
    %v1193 = vpop.f32.mrf.mxu0
    %1194 = vmatprep.mubr.f32.mxu0 %v752
    %1195 = vmatmul.mubr.f32.gmra.mxu0 %v751
    %v1196 = vpop.f32.mrf.mxu0
    %v1197 = vadd.f32 0.0, %v1196
    %v1198 = vpop.f32.mrf.mxu0
    %1199 = vmatprep.mubr.f32.mxu0 %v759
    %1200 = vmatmul.mubr.f32.gmra.mxu0 %v758
    %v1201 = vpop.f32.mrf.mxu0
    %v1202 = vadd.f32 0.0, %v1201
    %v1203 = vpop.f32.mrf.mxu0
    %1204 = vmatprep.mubr.f32.mxu0 %v766
    %1205 = vmatmul.mubr.f32.gmra.mxu0 %v765
    %v1206 = vpop.f32.mrf.mxu0
    %v1207 = vadd.f32 0.0, %v1206
    %v1208 = vpop.f32.mrf.mxu0
    %1209 = vdwg.mxu0
    %1210 = vmatprep.subr.mxu0 0.0
    %1211 = vmatpush1.msra.mxu0 %v691
    %1212 = vmatprep.subr.mxu0 0.0
    %1213 = vmatpush1.msra.mxu0 %v690
    %1214 = vmatprep.subr.mxu0 0.0
    %1215 = vmatpush1.msra.mxu0 %v689
    %1216 = vmatprep.subr.mxu0 0.0
    %1217 = vmatpush1.msra.mxu0 %v688
    %1218 = vmatprep.subr.mxu0 0.0
    %1219 = vmatpush1.msra.mxu0 %v687
    %1220 = vmatprep.subr.mxu0 0.0
    %1221 = vmatpush1.msra.mxu0 %v686
    %1222 = vmatprep.subr.mxu0 0.0
    %1223 = vmatpush1.msra.mxu0 %v685
    %1224 = vmatprep.subr.mxu0 0.0
    %1225 = vmatpush1.msra.mxu0 %v684
    %1226 = vmatprep.subr.mxu0 0.0
    %1227 = vmatpush1.msra.mxu0 %v683
    %1228 = vmatprep.subr.mxu0 0.0
    %1229 = vmatpush1.msra.mxu0 %v682
    %1230 = vmatprep.subr.mxu0 0.0
    %1231 = vmatpush1.msra.mxu0 %v681
    %1232 = vmatprep.subr.mxu0 0.0
    %1233 = vmatpush1.msra.mxu0 %v680
    %1234 = vmatprep.subr.mxu0 0.0
    %1235 = vmatpush1.msra.mxu0 %v679
    %1236 = vmatprep.subr.mxu0 0.0
    %1237 = vmatpush1.msra.mxu0 %v678
    %1238 = vmatprep.subr.mxu0 0.0
    %1239 = vmatpush1.msra.mxu0 %v677
    %1240 = vmatprep.subr.mxu0 0.0
    %1241 = vmatpush1.msra.mxu0 %v676
    %1242 = vmatprep.subr.mxu0 0.0
    %1243 = vmatpush2.msra.mxu0 %v707
    %1244 = vmatprep.subr.mxu0 0.0
    %1245 = vmatpush2.msra.mxu0 %v706
    %1246 = vmatprep.subr.mxu0 0.0
    %1247 = vmatpush2.msra.mxu0 %v705
    %1248 = vmatprep.subr.mxu0 0.0
    %1249 = vmatpush2.msra.mxu0 %v704
    %1250 = vmatprep.subr.mxu0 0.0
    %1251 = vmatpush2.msra.mxu0 %v703
    %1252 = vmatprep.subr.mxu0 0.0
    %1253 = vmatpush2.msra.mxu0 %v702
    %1254 = vmatprep.subr.mxu0 0.0
    %1255 = vmatpush2.msra.mxu0 %v701
    %1256 = vmatprep.subr.mxu0 0.0
    %1257 = vmatpush2.msra.mxu0 %v700
    %1258 = vmatprep.subr.mxu0 0.0
    %1259 = vmatpush2.msra.mxu0 %v699
    %1260 = vmatprep.subr.mxu0 0.0
    %1261 = vmatpush2.msra.mxu0 %v698
    %1262 = vmatprep.subr.mxu0 0.0
    %1263 = vmatpush2.msra.mxu0 %v697
    %1264 = vmatprep.subr.mxu0 0.0
    %1265 = vmatpush2.msra.mxu0 %v696
    %1266 = vmatprep.subr.mxu0 0.0
    %1267 = vmatpush2.msra.mxu0 %v695
    %1268 = vmatprep.subr.mxu0 0.0
    %1269 = vmatpush2.msra.mxu0 %v694
    %1270 = vmatprep.subr.mxu0 0.0
    %1271 = vmatpush2.msra.mxu0 %v693
    %1272 = vmatprep.subr.mxu0 0.0
    %1273 = vmatpush2.msra.mxu0 %v692
    %1274 = vmatprep.mubr.f32.mxu0 %v747
    %1275 = vmatmul.mubr.f32.gmra.mxu0 %v746
    %v1276 = vpop.f32.mrf.mxu0
    %v1277 = vadd.f32 %v1192, %v1276
    %v1278 = vpop.f32.mrf.mxu0
    %1279 = vmatprep.mubr.f32.mxu0 %v754
    %1280 = vmatmul.mubr.f32.gmra.mxu0 %v753
    %v1281 = vpop.f32.mrf.mxu0
    %v1282 = vadd.f32 %v1197, %v1281
    %v1283 = vpop.f32.mrf.mxu0
    %1284 = vmatprep.mubr.f32.mxu0 %v761
    %1285 = vmatmul.mubr.f32.gmra.mxu0 %v760
    %v1286 = vpop.f32.mrf.mxu0
    %v1287 = vadd.f32 %v1202, %v1286
    %v1288 = vpop.f32.mrf.mxu0
    %1289 = vmatprep.mubr.f32.mxu0 %v768
    %1290 = vmatmul.mubr.f32.gmra.mxu0 %v767
    %v1291 = vpop.f32.mrf.mxu0
    %v1292 = vadd.f32 %v1207, %v1291
    %v1293 = vpop.f32.mrf.mxu0
    %1294 = vdwg.mxu0
    %1295 = vmatprep.subr.mxu0 0.0
    %1296 = vmatpush1.msra.mxu0 %v723
    %1297 = vmatprep.subr.mxu0 0.0
    %1298 = vmatpush1.msra.mxu0 %v722
    %1299 = vmatprep.subr.mxu0 0.0
    %1300 = vmatpush1.msra.mxu0 %v721
    %1301 = vmatprep.subr.mxu0 0.0
    %1302 = vmatpush1.msra.mxu0 %v720
    %1303 = vmatprep.subr.mxu0 0.0
    %1304 = vmatpush1.msra.mxu0 %v719
    %1305 = vmatprep.subr.mxu0 0.0
    %1306 = vmatpush1.msra.mxu0 %v718
    %1307 = vmatprep.subr.mxu0 0.0
    %1308 = vmatpush1.msra.mxu0 %v717
    %1309 = vmatprep.subr.mxu0 0.0
    %1310 = vmatpush1.msra.mxu0 %v716
    %1311 = vmatprep.subr.mxu0 0.0
    %1312 = vmatpush1.msra.mxu0 %v715
    %1313 = vmatprep.subr.mxu0 0.0
    %1314 = vmatpush1.msra.mxu0 %v714
    %1315 = vmatprep.subr.mxu0 0.0
    %1316 = vmatpush1.msra.mxu0 %v713
    %1317 = vmatprep.subr.mxu0 0.0
    %1318 = vmatpush1.msra.mxu0 %v712
    %1319 = vmatprep.subr.mxu0 0.0
    %1320 = vmatpush1.msra.mxu0 %v711
    %1321 = vmatprep.subr.mxu0 0.0
    %1322 = vmatpush1.msra.mxu0 %v710
    %1323 = vmatprep.subr.mxu0 0.0
    %1324 = vmatpush1.msra.mxu0 %v709
    %1325 = vmatprep.subr.mxu0 0.0
    %1326 = vmatpush1.msra.mxu0 %v708
    %1327 = vmatprep.subr.mxu0 0.0
    %1328 = vmatpush2.msra.mxu0 %v739
    %1329 = vmatprep.subr.mxu0 0.0
    %1330 = vmatpush2.msra.mxu0 %v738
    %1331 = vmatprep.subr.mxu0 0.0
    %1332 = vmatpush2.msra.mxu0 %v737
    %1333 = vmatprep.subr.mxu0 0.0
    %1334 = vmatpush2.msra.mxu0 %v736
    %1335 = vmatprep.subr.mxu0 0.0
    %1336 = vmatpush2.msra.mxu0 %v735
    %1337 = vmatprep.subr.mxu0 0.0
    %1338 = vmatpush2.msra.mxu0 %v734
    %1339 = vmatprep.subr.mxu0 0.0
    %1340 = vmatpush2.msra.mxu0 %v733
    %1341 = vmatprep.subr.mxu0 0.0
    %1342 = vmatpush2.msra.mxu0 %v732
    %1343 = vmatprep.subr.mxu0 0.0
    %1344 = vmatpush2.msra.mxu0 %v731
    %1345 = vmatprep.subr.mxu0 0.0
    %1346 = vmatpush2.msra.mxu0 %v730
    %1347 = vmatprep.subr.mxu0 0.0
    %1348 = vmatpush2.msra.mxu0 %v729
    %1349 = vmatprep.subr.mxu0 0.0
    %1350 = vmatpush2.msra.mxu0 %v728
    %1351 = vmatprep.subr.mxu0 0.0
    %1352 = vmatpush2.msra.mxu0 %v727
    %1353 = vmatprep.subr.mxu0 0.0
    %1354 = vmatpush2.msra.mxu0 %v726
    %1355 = vmatprep.subr.mxu0 0.0
    %1356 = vmatpush2.msra.mxu0 %v725
    %1357 = vmatprep.subr.mxu0 0.0
    %1358 = vmatpush2.msra.mxu0 %v724
    %1359 = vmatprep.mubr.f32.mxu0 %v749
    %1360 = vmatmul.mubr.f32.gmra.mxu0 %v748
    %v1361 = vpop.f32.mrf.mxu0
    %v1362 = vadd.f32 %v1277, %v1361
    %v1363 = vpop.f32.mrf.mxu0
    %1364 = vmatprep.mubr.f32.mxu0 %v756
    %1365 = vmatmul.mubr.f32.gmra.mxu0 %v755
    %v1366 = vpop.f32.mrf.mxu0
    %v1367 = vadd.f32 %v1282, %v1366
    %v1368 = vpop.f32.mrf.mxu0
    %1369 = vmatprep.mubr.f32.mxu0 %v763
    %1370 = vmatmul.mubr.f32.gmra.mxu0 %v762
    %v1371 = vpop.f32.mrf.mxu0
    %v1372 = vadd.f32 %v1287, %v1371
    %v1373 = vpop.f32.mrf.mxu0
    %1374 = vmatprep.mubr.f32.mxu0 %v770
    %1375 = vmatmul.mubr.f32.gmra.mxu0 %v769
    %v1376 = vpop.f32.mrf.mxu0
    %v1377 = vadd.f32 %v1292, %v1376
    %v1378 = vpop.f32.mrf.mxu0
    %1379 = vdwg.mxu0
    %1380 = vmatprep.subr.mxu0 0.0
    %1381 = vmatpush1.msra.mxu0 0.0
    %1382 = vmatprep.subr.mxu0 0.0
    %1383 = vmatpush1.msra.mxu0 0.0
    %1384 = vmatprep.subr.mxu0 0.0
    %1385 = vmatpush1.msra.mxu0 0.0
    %1386 = vmatprep.subr.mxu0 0.0
    %1387 = vmatpush1.msra.mxu0 0.0
    %1388 = vmatprep.subr.mxu0 0.0
    %1389 = vmatpush1.msra.mxu0 0.0
    %1390 = vmatprep.subr.mxu0 0.0
    %1391 = vmatpush1.msra.mxu0 0.0
    %1392 = vmatprep.subr.mxu0 0.0
    %1393 = vmatpush1.msra.mxu0 0.0
    %1394 = vmatprep.subr.mxu0 0.0
    %1395 = vmatpush1.msra.mxu0 0.0
    %1396 = vmatprep.subr.mxu0 0.0
    %1397 = vmatpush1.msra.mxu0 0.0
    %1398 = vmatprep.subr.mxu0 0.0
    %1399 = vmatpush1.msra.mxu0 0.0
    %1400 = vmatprep.subr.mxu0 0.0
    %1401 = vmatpush1.msra.mxu0 0.0
    %1402 = vmatprep.subr.mxu0 0.0
    %1403 = vmatpush1.msra.mxu0 0.0
    %1404 = vmatprep.subr.mxu0 0.0
    %1405 = vmatpush1.msra.mxu0 %v743
    %1406 = vmatprep.subr.mxu0 0.0
    %1407 = vmatpush1.msra.mxu0 %v742
    %1408 = vmatprep.subr.mxu0 0.0
    %1409 = vmatpush1.msra.mxu0 %v741
    %1410 = vmatprep.subr.mxu0 0.0
    %1411 = vmatpush1.msra.mxu0 %v740
    %1412 = vmatprep.subr.mxu0 0.0
    %1413 = vmatpush2.msra.mxu0 0.0
    %1414 = vmatprep.subr.mxu0 0.0
    %1415 = vmatpush2.msra.mxu0 0.0
    %1416 = vmatprep.subr.mxu0 0.0
    %1417 = vmatpush2.msra.mxu0 0.0
    %1418 = vmatprep.subr.mxu0 0.0
    %1419 = vmatpush2.msra.mxu0 0.0
    %1420 = vmatprep.subr.mxu0 0.0
    %1421 = vmatpush2.msra.mxu0 0.0
    %1422 = vmatprep.subr.mxu0 0.0
    %1423 = vmatpush2.msra.mxu0 0.0
    %1424 = vmatprep.subr.mxu0 0.0
    %1425 = vmatpush2.msra.mxu0 0.0
    %1426 = vmatprep.subr.mxu0 0.0
    %1427 = vmatpush2.msra.mxu0 0.0
    %1428 = vmatprep.subr.mxu0 0.0
    %1429 = vmatpush2.msra.mxu0 0.0
    %1430 = vmatprep.subr.mxu0 0.0
    %1431 = vmatpush2.msra.mxu0 0.0
    %1432 = vmatprep.subr.mxu0 0.0
    %1433 = vmatpush2.msra.mxu0 0.0
    %1434 = vmatprep.subr.mxu0 0.0
    %1435 = vmatpush2.msra.mxu0 0.0
    %1436 = vmatprep.subr.mxu0 0.0
    %1437 = vmatpush2.msra.mxu0 0.0
    %1438 = vmatprep.subr.mxu0 0.0
    %1439 = vmatpush2.msra.mxu0 0.0
    %1440 = vmatprep.subr.mxu0 0.0
    %1441 = vmatpush2.msra.mxu0 0.0
    %1442 = vmatprep.subr.mxu0 0.0
    %1443 = vmatpush2.msra.mxu0 0.0
    %1444 = vmatprep.mubr.f32.mxu0 0.0
    %1445 = vmatmul.mubr.f32.gmra.mxu0 %v774
    %v1446 = vpop.f32.mrf.mxu0
    %v1447 = vadd.f32 %v1362, %v1446
    %v1448 = vpop.f32.mrf.mxu0
    %1449 = vmatprep.mubr.f32.mxu0 0.0
    %1450 = vmatmul.mubr.f32.gmra.mxu0 %v777
    %v1451 = vpop.f32.mrf.mxu0
    %v1452 = vadd.f32 %v1367, %v1451
    %v1453 = vpop.f32.mrf.mxu0
    %1454 = vmatprep.mubr.f32.mxu0 0.0
    %1455 = vmatmul.mubr.f32.gmra.mxu0 %v780
    %v1456 = vpop.f32.mrf.mxu0
    %v1457 = vadd.f32 %v1372, %v1456
    %v1458 = vpop.f32.mrf.mxu0
    %1459 = vmatprep.mubr.f32.mxu0 0.0
    %1460 = vmatmul.mubr.f32.gmra.mxu0 %v783
    %v1461 = vpop.f32.mrf.mxu0
    %v1462 = vadd.f32 %v1377, %v1461
    %v1463 = vpop.f32.mrf.mxu0
    %1464 = vdwg.mxu0
    %v1465 = vld [vmem:[%s2] sm:$0x1]
    %s1466 = sld [smem:[#allocation2]]
    %v1467 = vstv %s1466
    %vm1468 = vcmask 523264
    %v1470 = vsel %vm1468, %v1465, 0
    %1472 = vmatprep.subr.mxu0 0.0
    %1473 = vmatpush1.msra.mxu0 0.0
    %1474 = vmatprep.subr.mxu0 0.0
    %1475 = vmatpush1.msra.mxu0 0.0
    %1476 = vmatprep.subr.mxu0 0.0
    %1477 = vmatpush1.msra.mxu0 0.0
    %1478 = vmatprep.subr.mxu0 0.0
    %1479 = vmatpush1.msra.mxu0 0.0
    %1480 = vmatprep.subr.mxu0 0.0
    %1481 = vmatpush1.msra.mxu0 0.0
    %1482 = vmatprep.subr.mxu0 0.0
    %1483 = vmatpush1.msra.mxu0 0.0
    %1484 = vmatprep.subr.mxu0 0.0
    %1485 = vmatpush1.msra.mxu0 0.0
    %1486 = vmatprep.subr.mxu0 0.0
    %1487 = vmatpush1.msra.mxu0 0.0
    %1488 = vmatprep.subr.mxu0 0.0
    %1489 = vmatpush1.msra.mxu0 %v1462
    %1490 = vmatprep.subr.mxu0 0.0
    %1491 = vmatpush1.msra.mxu0 %v1457
    %1492 = vmatprep.subr.mxu0 0.0
    %1493 = vmatpush1.msra.mxu0 %v1452
    %1494 = vmatprep.subr.mxu0 0.0
    %1495 = vmatpush1.msra.mxu0 %v1447
    %1496 = vmatprep.subr.mxu0 0.0
    %1497 = vmatpush1.msra.mxu0 %v1122
    %1498 = vmatprep.subr.mxu0 0.0
    %1499 = vmatpush1.msra.mxu0 %v1117
    %1500 = vmatprep.subr.mxu0 0.0
    %1501 = vmatpush1.msra.mxu0 %v1112
    %1502 = vmatprep.subr.mxu0 0.0
    %1503 = vmatpush1.msra.mxu0 %v1107
    %1504 = vmatprep.subr.mxu0 0.0
    %1505 = vmatpush2.msra.mxu0 0.0
    %1506 = vmatprep.subr.mxu0 0.0
    %1507 = vmatpush2.msra.mxu0 0.0
    %1508 = vmatprep.subr.mxu0 0.0
    %1509 = vmatpush2.msra.mxu0 0.0
    %1510 = vmatprep.subr.mxu0 0.0
    %1511 = vmatpush2.msra.mxu0 0.0
    %1512 = vmatprep.subr.mxu0 0.0
    %1513 = vmatpush2.msra.mxu0 0.0
    %1514 = vmatprep.subr.mxu0 0.0
    %1515 = vmatpush2.msra.mxu0 0.0
    %1516 = vmatprep.subr.mxu0 0.0
    %1517 = vmatpush2.msra.mxu0 0.0
    %1518 = vmatprep.subr.mxu0 0.0
    %1519 = vmatpush2.msra.mxu0 0.0
    %1520 = vmatprep.subr.mxu0 0.0
    %1521 = vmatpush2.msra.mxu0 0.0
    %1522 = vmatprep.subr.mxu0 0.0
    %1523 = vmatpush2.msra.mxu0 0.0
    %1524 = vmatprep.subr.mxu0 0.0
    %1525 = vmatpush2.msra.mxu0 0.0
    %1526 = vmatprep.subr.mxu0 0.0
    %1527 = vmatpush2.msra.mxu0 0.0
    %1528 = vmatprep.subr.mxu0 0.0
    %1529 = vmatpush2.msra.mxu0 0.0
    %1530 = vmatprep.subr.mxu0 0.0
    %1531 = vmatpush2.msra.mxu0 0.0
    %1532 = vmatprep.subr.mxu0 0.0
    %1533 = vmatpush2.msra.mxu0 0.0
    %1534 = vmatprep.subr.mxu0 0.0
    %1535 = vmatpush2.msra.mxu0 0.0
    %1536 = vmatprep.mubr.f32.mxu0 0.0
    %1537 = vmatmul.mubr.f32.gmra.mxu0 %v1470
    %v1538 = vpop.f32.mrf.mxu0
    %v1539 = vadd.f32 %v1467, %v1538
    %v1540 = vpop.f32.mrf.mxu0
    %1541 = vdwg.mxu0
    %v1542 = vxor.u32 %v1539, 2147483648
    %v1543 = vmul.f32 %v1542, 1.442695
    %v1544 = vpow.pop %v1543
    %v1545 = vadd.f32 %v1544, 1.0
    %v1546 = vrcp.pop %v1545
    %v1547 = vmul.f32 1.0, %v1546
    %1548 = vst [vmem:[#allocation6] sm:$0x1] %v1547
    // Predicated region
    $region22: #{tpu_custom_call.1} parent=1 // pred_check
      _
    $region23: #{tpu_custom_call.1} parent=1 // pred_check_branch
      %1550 = sbr.rel (0) target = $region25
    $region24: #{tpu_custom_call.1} parent=1 // pred_region
      %s1552 = ssub.s32 16, 16
      %1553 = vsyncadd [#allocation5], %s1552
      %s1555 = sshll.u32 [#allocation6], 4
      %s1556 = int_to_ptr.vmem [resolvable:$true] %s1555
      %1558 = dma.vmem_to_hbm [thread:$0]  %s1556, 16, %s4, [#allocation5]
    $region25: #{tpu_custom_call.1} parent=1 // pred_fallthru
      _
    // Predicated region
    $region26: #{tpu_custom_call.1} parent=1 // pred_check
      _
    $region27: #{tpu_custom_call.1} parent=1 // pred_check_branch
      %1560 = sbr.rel (0) target = $region29
    $region28: #{tpu_custom_call.1} parent=1 // pred_region
      %1561 = dma.done [#allocation5], 16
    $region29: #{tpu_custom_call.1} parent=1 // pred_fallthru
      _
    %1562 = vsyncpa [#allocation4], 1
    %1563 = vsyncpa [#allocation5], 1

</llo_original>
